<compile_context>
chip_gen: v7x
topology: tpu7x:2x2x1
jax: 0.10.0
libtpu: 0.0.40
codegen_flags: <defaults>
</compile_context>

<pallas_src>
import functools

import jax
import jax.numpy as jnp
from jax.experimental import pallas as pl
from jax.experimental.pallas import tpu as pltpu

LEAKY_SLOPE = 0.01   # nn.LeakyReLU default negative_slope
BN_EPS = 1e-5        # nn.BatchNorm2d default eps


def _leaky_relu(x):
    return jnp.where(x > 0, x, LEAKY_SLOPE * x)


def residual_block_kernel(x_ref, b1_ref, b2_ref, bsc_ref, p_ref, out_ref,
                          *, N, H, W):
    """Lane-dense fused ResidualBlock.

    x_ref   : (N*H, W*Cin)        activation slab
    b1_ref  : (3, W*Cin,  W*Cout) block-tridiagonal conv1 weights (one per dy)
    b2_ref  : (3, W*Cout, W*Cout) block-tridiagonal conv2 weights
    bsc_ref : (W*Cin, W*Cout)     block-diagonal 1x1 shortcut weights
    p_ref   : (5, W*Cout)         [g1; b1; g2; b2; shortcut bias], pre-tiled
    out_ref : (N*H, W*Cout)
    """
    NH, _ = x_ref.shape
    WCout = out_ref.shape[-1]
    Cout = WCout // W
    count = N * H * W

    x = x_ref[...]                                    # (NH, W*Cin) f32

    # Per-row image coordinates; top/bottom-row masks shared by both convs.
    r = jax.lax.broadcasted_iota(jnp.int32, (NH, 1), 0)
    i_idx = r % H                                     # row index within image
    top = i_idx == 0
    bot = i_idx == H - 1

    def conv3x3(a, band_ref):
        # 3 row-shifted matmuls against block-banded weights.  Row shift is a
        # static slice + zero row; per-image boundary rows are masked to zero
        # (the dx / column padding is folded into the banded weight matrix).
        wc = a.shape[-1]
        zrow = jnp.zeros((1, wc), jnp.float32)
        a_up = jnp.where(top, 0.0, jnp.concatenate([zrow, a[:-1, :]], axis=0))
        a_dn = jnp.where(bot, 0.0, jnp.concatenate([a[1:, :], zrow], axis=0))
        # On v7x these three dots can accumulate in the MRB; on v5e/v6e the
        # two VPU adds are cheap filler.
        acc = jnp.dot(a_up, band_ref[0], preferred_element_type=jnp.float32)
        acc = acc + jnp.dot(a, band_ref[1], preferred_element_type=jnp.float32)
        acc = acc + jnp.dot(a_dn, band_ref[2], preferred_element_type=jnp.float32)
        return acc

    def batchnorm(y, g_col, b_col):
        # Training-mode batch statistics (biased variance), single pass, f32.
        # Cross-sublane sum over the NH rows, then a lane roll+add tree with
        # stride Cout that merges the W column groups AND broadcasts the
        # per-channel sums back to every group in one go.
        s = jnp.concatenate(
            [jnp.sum(y, axis=0, keepdims=True),
             jnp.sum(y * y, axis=0, keepdims=True)], axis=0)   # (2, W*Cout)
        step = 1
        while step < W:                       # W is a power of two (asserted)
            s = s + pltpu.roll(s, shift=step * Cout, axis=1)
            step *= 2
        inv_n = 1.0 / count
        mean = s[0:1, :] * inv_n
        ex2 = s[1:2, :] * inv_n
        var = ex2 - mean * mean
        scale = g_col * jax.lax.rsqrt(var + BN_EPS)
        return (y - mean) * scale + b_col

    g1 = p_ref[0:1, :]
    b1 = p_ref[1:2, :]
    g2 = p_ref[2:3, :]
    b2 = p_ref[3:4, :]
    bsc_bias = p_ref[4:5, :]

    # ---- DoubleConv ----
    y = batchnorm(_leaky_relu(conv3x3(x, b1_ref)), g1, b1)
    y = batchnorm(_leaky_relu(conv3x3(y, b2_ref)), g2, b2)

    # ---- shortcut: 1x1 conv (block-diagonal matmul) + bias ----
    res = jnp.dot(x, bsc_ref[...], preferred_element_type=jnp.float32) + bsc_bias

    # ---- residual add + final LeakyReLU, already lane-dense ----
    out_ref[...] = _leaky_relu(y + res)               # (NH, W*Cout)


def _banded_conv_weights(w, W):
    """w: (3, 3, Cin, Cout) HWIO -> (3, W*Cin, W*Cout).

    One block-tridiagonal matrix per kernel row dy; entry
    [jp*Cin + c, j*Cout + o] = w[dy, (jp-j)+1, c, o] for |jp-j| <= 1, else 0,
    which also encodes the left/right zero padding.  Built at trace time.
    """
    _, _, Cin, Cout = w.shape
    j = jnp.arange(W)
    bands = []
    for dy in range(3):
        b = jnp.zeros((W, Cin, W, Cout), w.dtype)
        for dx_idx, dx in enumerate((-1, 0, 1)):
            sel = (j[:, None] == j[None, :] + dx).astype(w.dtype)  # (src jp, dst j)
            b = b + jnp.einsum("pq,co->pcqo", sel, w[dy, dx_idx])
        bands.append(b.reshape(W * Cin, W * Cout))
    return jnp.stack(bands)


def _block_diag_1x1(ws, W):
    """ws: (Cin, Cout) -> block-diagonal (W*Cin, W*Cout) for the 1x1 conv."""
    Cin, Cout = ws.shape
    eye = jnp.eye(W, dtype=ws.dtype)
    return jnp.einsum("pq,co->pcqo", eye, ws).reshape(W * Cin, W * Cout)


def _tile_cols(v, W):
    """(1, C) or (C,) per-channel vector -> (1, W*C) lane-dense row."""
    return jnp.tile(jnp.reshape(v, (1, -1)), (1, W))


def residual_block(x, params):
    """x: (N, H, W, Cin) float32, NHWC."""
    N, H, W, Cin = x.shape
    w1, g1, b1, w2, g2, b2, ws, bs = params
    Cout = w1.shape[-1]
    assert W & (W - 1) == 0, "lane roll-tree BN reduction assumes power-of-two W"

    x2d = x.reshape(N * H, W * Cin)              # lane-dense slab (free reshape)
    b1_band = _banded_conv_weights(w1, W)        # (3, W*Cin,  W*Cout)
    b2_band = _banded_conv_weights(w2, W)        # (3, W*Cout, W*Cout)
    bsc = _block_diag_1x1(ws, W)                 # (W*Cin, W*Cout)
    p_pack = jnp.concatenate(
        [_tile_cols(g1, W), _tile_cols(b1, W),
         _tile_cols(g2, W), _tile_cols(b2, W),
         _tile_cols(bs, W)], axis=0)             # (5, W*Cout) single param DMA

    vmem = pl.BlockSpec(memory_space=pltpu.MemorySpace.VMEM)
    kernel = functools.partial(residual_block_kernel, N=N, H=H, W=W)
    # TODO(synk): at production shapes, tile over H (halo rows) with a grid +
    # BlockSpec pipelining and dimension_semantics=("parallel", ...) so v7x's
    # two TensorCores are used (sized against its 64 MiB physical / 32 MiB
    # scoped VMEM via pltpu.CompilerParams(vmem_limit_bytes=...)); that needs
    # a two-phase (stats + normalize) or cross-core-reduced training-mode
    # BatchNorm, so the toy-size kernel stays grid-less.
    out2d = pl.pallas_call(
        kernel,
        out_shape=jax.ShapeDtypeStruct((N * H, W * Cout), jnp.float32),
        in_specs=[vmem] * 5,
        out_specs=vmem,
    )(x2d, b1_band, b2_band, bsc, p_pack)
    return out2d.reshape(N, H, W, Cout)


def reference(x, params):
    """Pure-JAX reference of the same forward (NHWC)."""
    w1, g1, b1, w2, g2, b2, ws, bs = params

    def conv3x3(inp, w):
        return jax.lax.conv_general_dilated(
            inp, w, window_strides=(1, 1), padding=((1, 1), (1, 1)),
            dimension_numbers=("NHWC", "HWIO", "NHWC"))

    def bn(inp, gamma, beta):
        mean = jnp.mean(inp, axis=(0, 1, 2), keepdims=True)
        var = jnp.mean((inp - mean) ** 2, axis=(0, 1, 2), keepdims=True)
        return ((inp - mean) * jax.lax.rsqrt(var + BN_EPS)
                * gamma.reshape(1, 1, 1, -1) + beta.reshape(1, 1, 1, -1))

    y = bn(_leaky_relu(conv3x3(x, w1)), g1, b1)
    y = bn(_leaky_relu(conv3x3(y, w2)), g2, b2)
    res = jnp.einsum("nhwc,co->nhwo", x, ws) + bs.reshape(1, 1, 1, -1)
    return _leaky_relu(y + res)


if __name__ == "__main__":
    # small shapes: batch=2, in_channels=4, out_channels=8, spatial=16x16
    N, H, W, Cin, Cout = 2, 16, 16, 4, 8

    key = jax.random.PRNGKey(0)
    ks = jax.random.split(key, 8)
    x = jax.random.normal(ks[0], (N, H, W, Cin), jnp.float32)

    w1 = jax.random.normal(ks[1], (3, 3, Cin, Cout), jnp.float32) * 0.2
    g1 = 1.0 + 0.1 * jax.random.normal(ks[2], (1, Cout), jnp.float32)
    b1 = 0.1 * jax.random.normal(ks[3], (1, Cout), jnp.float32)
    w2 = jax.random.normal(ks[4], (3, 3, Cout, Cout), jnp.float32) * 0.2
    g2 = 1.0 + 0.1 * jax.random.normal(ks[5], (1, Cout), jnp.float32)
    b2 = 0.1 * jax.random.normal(ks[6], (1, Cout), jnp.float32)
    ws = jax.random.normal(ks[7], (Cin, Cout), jnp.float32) * 0.2
    bs = 0.05 * jnp.arange(Cout, dtype=jnp.float32).reshape(1, Cout)

    params = (w1, g1, b1, w2, g2, b2, ws, bs)

    out = jax.block_until_ready(residual_block(x, params))
    ref = jax.block_until_ready(reference(x, params))

    assert out.shape == (N, H, W, Cout)
    assert jnp.allclose(out, ref, atol=1e-3, rtol=1e-3), (
        float(jnp.max(jnp.abs(out - ref))))

    # TODO(synk): BatchNorm running-stats (module state) update is a PyTorch
    # side effect and is not replicated; normalization itself uses batch stats
    # exactly as nn.BatchNorm2d does in train mode.
    print("KERNEL_OK")
</pallas_src>

<mosaic_0001>
module attributes {stable_mosaic.version = 11 : i64} {
  func.func @residual_block_kernel(%arg0: memref<32x64xf32, #tpu.memory_space<vmem>>, %arg1: memref<3x64x128xf32, #tpu.memory_space<vmem>>, %arg2: memref<3x128x128xf32, #tpu.memory_space<vmem>>, %arg3: memref<64x128xf32, #tpu.memory_space<vmem>>, %arg4: memref<5x128xf32, #tpu.memory_space<vmem>>, %arg5: memref<32x128xf32, #tpu.memory_space<vmem>>) attributes {dimension_semantics = [], scalar_prefetch = 0 : i64, scratch_operands = 0 : i64, tpu.core_type = #tpu.core_type<tc>} {
    %c0 = arith.constant 0 : index
    %c0_0 = arith.constant 0 : index
    %0 = vector.load %arg0[%c0, %c0_0] : memref<32x64xf32, #tpu.memory_space<vmem>>, vector<32x64xf32>
    %1 = tpu.iota {dimensions = array<i32: 0>} : vector<32x1xi32>
    %c16_i32 = arith.constant 16 : i32
    %c0_i32 = arith.constant 0 : i32
    %2 = arith.cmpi eq, %c16_i32, %c0_i32 : i32
    %c1_i32 = arith.constant 1 : i32
    %3 = arith.select %2, %c1_i32, %c16_i32 : i32
    %4 = vector.broadcast %3 : i32 to vector<32x1xi32>
    %5 = arith.remsi %1, %4 : vector<32x1xi32>
    %c0_i32_1 = arith.constant 0 : i32
    %6 = vector.broadcast %c0_i32_1 : i32 to vector<32x1xi32>
    %7 = arith.cmpi ne, %5, %6 : vector<32x1xi32>
    %c0_i32_2 = arith.constant 0 : i32
    %8 = vector.broadcast %c0_i32_2 : i32 to vector<32x1xi32>
    %9 = arith.cmpi slt, %5, %8 : vector<32x1xi32>
    %c0_i32_3 = arith.constant 0 : i32
    %10 = arith.cmpi slt, %3, %c0_i32_3 : i32
    %11 = vector.broadcast %10 : i1 to vector<32x1xi1>
    %12 = vector.broadcast %11 : vector<32x1xi1> to vector<32x1xi1>
    %13 = arith.xori %9, %12 : vector<32x1xi1>
    %14 = arith.andi %13, %7 : vector<32x1xi1>
    %15 = vector.broadcast %3 : i32 to vector<32x1xi32>
    %16 = arith.addi %5, %15 : vector<32x1xi32>
    %17 = arith.select %14, %16, %5 : vector<32x1xi1>, vector<32x1xi32>
    %c0_i32_4 = arith.constant 0 : i32
    %18 = vector.broadcast %c0_i32_4 : i32 to vector<32x1xi32>
    %19 = arith.cmpi eq, %17, %18 : vector<32x1xi32>
    %c15_i32 = arith.constant 15 : i32
    %20 = vector.broadcast %c15_i32 : i32 to vector<32x1xi32>
    %21 = arith.cmpi eq, %17, %20 : vector<32x1xi32>
    %c0_5 = arith.constant 0 : index
    %c0_6 = arith.constant 0 : index
    %22 = vector.load %arg4[%c0_5, %c0_6] : memref<5x128xf32, #tpu.memory_space<vmem>>, vector<1x128xf32>
    %c1 = arith.constant 1 : index
    %c0_7 = arith.constant 0 : index
    %23 = vector.load %arg4[%c1, %c0_7] : memref<5x128xf32, #tpu.memory_space<vmem>>, vector<1x128xf32>
    %c2 = arith.constant 2 : index
    %c0_8 = arith.constant 0 : index
    %24 = vector.load %arg4[%c2, %c0_8] : memref<5x128xf32, #tpu.memory_space<vmem>>, vector<1x128xf32>
    %c3 = arith.constant 3 : index
    %c0_9 = arith.constant 0 : index
    %25 = vector.load %arg4[%c3, %c0_9] : memref<5x128xf32, #tpu.memory_space<vmem>>, vector<1x128xf32>
    %c4 = arith.constant 4 : index
    %c0_10 = arith.constant 0 : index
    %26 = vector.load %arg4[%c4, %c0_10] : memref<5x128xf32, #tpu.memory_space<vmem>>, vector<1x128xf32>
    %cst = arith.constant 0.000000e+00 : f32
    %27 = vector.broadcast %cst : f32 to vector<1x64xf32>
    %28 = vector.extract_strided_slice %0 {offsets = [0, 0], sizes = [31, 64], strides = [1, 1]} : vector<32x64xf32> to vector<31x64xf32>
    %29 = tpu.concatenate %27, %28 in 0 : vector<1x64xf32>, vector<31x64xf32> -> vector<32x64xf32>
    %cst_11 = arith.constant 0.000000e+00 : f32
    %30 = vector.shape_cast %19 : vector<32x1xi1> to vector<32x1xi1>
    %31 = vector.broadcast %30 : vector<32x1xi1> to vector<32x64xi1>
    %32 = vector.broadcast %cst_11 : f32 to vector<32x64xf32>
    %33 = arith.select %31, %32, %29 : vector<32x64xi1>, vector<32x64xf32>
    %34 = vector.extract_strided_slice %0 {offsets = [1, 0], sizes = [31, 64], strides = [1, 1]} : vector<32x64xf32> to vector<31x64xf32>
    %35 = tpu.concatenate %34, %27 in 0 : vector<31x64xf32>, vector<1x64xf32> -> vector<32x64xf32>
    %cst_12 = arith.constant 0.000000e+00 : f32
    %36 = vector.shape_cast %21 : vector<32x1xi1> to vector<32x1xi1>
    %37 = vector.broadcast %36 : vector<32x1xi1> to vector<32x64xi1>
    %38 = vector.broadcast %cst_12 : f32 to vector<32x64xf32>
    %39 = arith.select %37, %38, %35 : vector<32x64xi1>, vector<32x64xf32>
    %c0_13 = arith.constant 0 : index
    %c0_14 = arith.constant 0 : index
    %c0_15 = arith.constant 0 : index
    %40 = vector.load %arg1[%c0_13, %c0_14, %c0_15] : memref<3x64x128xf32, #tpu.memory_space<vmem>>, vector<1x64x128xf32>
    %41 = vector.shape_cast %40 : vector<1x64x128xf32> to vector<64x128xf32>
    %cst_16 = arith.constant dense<0.000000e+00> : vector<32x128xf32>
    %42 = tpu.matmul %33, %41, %cst_16 {dimension_numbers = #tpu.dot_dimension_numbers<[1], [0], [0], [1], [0, 0, 1, 1], [], []>} : vector<32x64xf32>, vector<64x128xf32>, vector<32x128xf32> -> vector<32x128xf32>
    %c1_17 = arith.constant 1 : index
    %c0_18 = arith.constant 0 : index
    %c0_19 = arith.constant 0 : index
    %43 = vector.load %arg1[%c1_17, %c0_18, %c0_19] : memref<3x64x128xf32, #tpu.memory_space<vmem>>, vector<1x64x128xf32>
    %44 = vector.shape_cast %43 : vector<1x64x128xf32> to vector<64x128xf32>
    %cst_20 = arith.constant dense<0.000000e+00> : vector<32x128xf32>
    %45 = tpu.matmul %0, %44, %cst_20 {dimension_numbers = #tpu.dot_dimension_numbers<[1], [0], [0], [1], [0, 0, 1, 1], [], []>} : vector<32x64xf32>, vector<64x128xf32>, vector<32x128xf32> -> vector<32x128xf32>
    %46 = arith.addf %42, %45 : vector<32x128xf32>
    %c2_21 = arith.constant 2 : index
    %c0_22 = arith.constant 0 : index
    %c0_23 = arith.constant 0 : index
    %47 = vector.load %arg1[%c2_21, %c0_22, %c0_23] : memref<3x64x128xf32, #tpu.memory_space<vmem>>, vector<1x64x128xf32>
    %48 = vector.shape_cast %47 : vector<1x64x128xf32> to vector<64x128xf32>
    %cst_24 = arith.constant dense<0.000000e+00> : vector<32x128xf32>
    %49 = tpu.matmul %39, %48, %cst_24 {dimension_numbers = #tpu.dot_dimension_numbers<[1], [0], [0], [1], [0, 0, 1, 1], [], []>} : vector<32x64xf32>, vector<64x128xf32>, vector<32x128xf32> -> vector<32x128xf32>
    %50 = arith.addf %46, %49 : vector<32x128xf32>
    %cst_25 = arith.constant 0.000000e+00 : f32
    %51 = vector.broadcast %cst_25 : f32 to vector<32x128xf32>
    %52 = arith.cmpf ogt, %50, %51 : vector<32x128xf32>
    %cst_26 = arith.constant 0.00999999977 : f32
    %53 = vector.broadcast %cst_26 : f32 to vector<32x128xf32>
    %54 = arith.mulf %53, %50 : vector<32x128xf32>
    %55 = arith.select %52, %50, %54 : vector<32x128xi1>, vector<32x128xf32>
    %cst_27 = arith.constant dense<0.000000e+00> : vector<128xf32>
    %56 = vector.multi_reduction <add>, %55, %cst_27 [0] : vector<32x128xf32> to vector<128xf32>
    %57 = vector.shape_cast %56 : vector<128xf32> to vector<1x128xf32>
    %58 = arith.mulf %55, %55 : vector<32x128xf32>
    %cst_28 = arith.constant dense<0.000000e+00> : vector<128xf32>
    %59 = vector.multi_reduction <add>, %58, %cst_28 [0] : vector<32x128xf32> to vector<128xf32>
    %60 = vector.shape_cast %59 : vector<128xf32> to vector<1x128xf32>
    %61 = tpu.concatenate %57, %60 in 0 : vector<1x128xf32>, vector<1x128xf32> -> vector<2x128xf32>
    %c8_i32 = arith.constant 8 : i32
    %62 = tpu.dynamic_rotate %61 by %c8_i32 dim 1 : vector<2x128xf32>, i32 -> vector<2x128xf32>
    %63 = arith.addf %61, %62 : vector<2x128xf32>
    %c16_i32_29 = arith.constant 16 : i32
    %64 = tpu.dynamic_rotate %63 by %c16_i32_29 dim 1 : vector<2x128xf32>, i32 -> vector<2x128xf32>
    %65 = arith.addf %63, %64 : vector<2x128xf32>
    %c32_i32 = arith.constant 32 : i32
    %66 = tpu.dynamic_rotate %65 by %c32_i32 dim 1 : vector<2x128xf32>, i32 -> vector<2x128xf32>
    %67 = arith.addf %65, %66 : vector<2x128xf32>
    %c64_i32 = arith.constant 64 : i32
    %68 = tpu.dynamic_rotate %67 by %c64_i32 dim 1 : vector<2x128xf32>, i32 -> vector<2x128xf32>
    %69 = arith.addf %67, %68 : vector<2x128xf32>
    %70 = vector.extract_strided_slice %69 {offsets = [0, 0], sizes = [1, 128], strides = [1, 1]} : vector<2x128xf32> to vector<1x128xf32>
    %cst_30 = arith.constant 0.001953125 : f32
    %71 = vector.broadcast %cst_30 : f32 to vector<1x128xf32>
    %72 = arith.mulf %70, %71 : vector<1x128xf32>
    %73 = vector.extract_strided_slice %69 {offsets = [1, 0], sizes = [1, 128], strides = [1, 1]} : vector<2x128xf32> to vector<1x128xf32>
    %cst_31 = arith.constant 0.001953125 : f32
    %74 = vector.broadcast %cst_31 : f32 to vector<1x128xf32>
    %75 = arith.mulf %73, %74 : vector<1x128xf32>
    %76 = arith.mulf %72, %72 : vector<1x128xf32>
    %77 = arith.subf %75, %76 : vector<1x128xf32>
    %cst_32 = arith.constant 9.99999974E-6 : f32
    %78 = vector.broadcast %cst_32 : f32 to vector<1x128xf32>
    %79 = arith.addf %77, %78 : vector<1x128xf32>
    %80 = math.rsqrt %79 : vector<1x128xf32>
    %81 = arith.mulf %22, %80 : vector<1x128xf32>
    %82 = vector.broadcast %72 : vector<1x128xf32> to vector<32x128xf32>
    %83 = arith.subf %55, %82 : vector<32x128xf32>
    %84 = vector.broadcast %81 : vector<1x128xf32> to vector<32x128xf32>
    %85 = arith.mulf %83, %84 : vector<32x128xf32>
    %86 = vector.broadcast %23 : vector<1x128xf32> to vector<32x128xf32>
    %87 = arith.addf %85, %86 : vector<32x128xf32>
    %cst_33 = arith.constant 0.000000e+00 : f32
    %88 = vector.broadcast %cst_33 : f32 to vector<1x128xf32>
    %89 = vector.extract_strided_slice %87 {offsets = [0, 0], sizes = [31, 128], strides = [1, 1]} : vector<32x128xf32> to vector<31x128xf32>
    %90 = tpu.concatenate %88, %89 in 0 : vector<1x128xf32>, vector<31x128xf32> -> vector<32x128xf32>
    %cst_34 = arith.constant 0.000000e+00 : f32
    %91 = vector.shape_cast %19 : vector<32x1xi1> to vector<32x1xi1>
    %92 = vector.broadcast %91 : vector<32x1xi1> to vector<32x128xi1>
    %93 = vector.broadcast %cst_34 : f32 to vector<32x128xf32>
    %94 = arith.select %92, %93, %90 : vector<32x128xi1>, vector<32x128xf32>
    %95 = vector.extract_strided_slice %87 {offsets = [1, 0], sizes = [31, 128], strides = [1, 1]} : vector<32x128xf32> to vector<31x128xf32>
    %96 = tpu.concatenate %95, %88 in 0 : vector<31x128xf32>, vector<1x128xf32> -> vector<32x128xf32>
    %cst_35 = arith.constant 0.000000e+00 : f32
    %97 = vector.shape_cast %21 : vector<32x1xi1> to vector<32x1xi1>
    %98 = vector.broadcast %97 : vector<32x1xi1> to vector<32x128xi1>
    %99 = vector.broadcast %cst_35 : f32 to vector<32x128xf32>
    %100 = arith.select %98, %99, %96 : vector<32x128xi1>, vector<32x128xf32>
    %c0_36 = arith.constant 0 : index
    %c0_37 = arith.constant 0 : index
    %c0_38 = arith.constant 0 : index
    %101 = vector.load %arg2[%c0_36, %c0_37, %c0_38] : memref<3x128x128xf32, #tpu.memory_space<vmem>>, vector<1x128x128xf32>
    %102 = vector.shape_cast %101 : vector<1x128x128xf32> to vector<128x128xf32>
    %cst_39 = arith.constant dense<0.000000e+00> : vector<32x128xf32>
    %103 = tpu.matmul %94, %102, %cst_39 {dimension_numbers = #tpu.dot_dimension_numbers<[1], [0], [0], [1], [0, 0, 1, 1], [], []>} : vector<32x128xf32>, vector<128x128xf32>, vector<32x128xf32> -> vector<32x128xf32>
    %c1_40 = arith.constant 1 : index
    %c0_41 = arith.constant 0 : index
    %c0_42 = arith.constant 0 : index
    %104 = vector.load %arg2[%c1_40, %c0_41, %c0_42] : memref<3x128x128xf32, #tpu.memory_space<vmem>>, vector<1x128x128xf32>
    %105 = vector.shape_cast %104 : vector<1x128x128xf32> to vector<128x128xf32>
    %cst_43 = arith.constant dense<0.000000e+00> : vector<32x128xf32>
    %106 = tpu.matmul %87, %105, %cst_43 {dimension_numbers = #tpu.dot_dimension_numbers<[1], [0], [0], [1], [0, 0, 1, 1], [], []>} : vector<32x128xf32>, vector<128x128xf32>, vector<32x128xf32> -> vector<32x128xf32>
    %107 = arith.addf %103, %106 : vector<32x128xf32>
    %c2_44 = arith.constant 2 : index
    %c0_45 = arith.constant 0 : index
    %c0_46 = arith.constant 0 : index
    %108 = vector.load %arg2[%c2_44, %c0_45, %c0_46] : memref<3x128x128xf32, #tpu.memory_space<vmem>>, vector<1x128x128xf32>
    %109 = vector.shape_cast %108 : vector<1x128x128xf32> to vector<128x128xf32>
    %cst_47 = arith.constant dense<0.000000e+00> : vector<32x128xf32>
    %110 = tpu.matmul %100, %109, %cst_47 {dimension_numbers = #tpu.dot_dimension_numbers<[1], [0], [0], [1], [0, 0, 1, 1], [], []>} : vector<32x128xf32>, vector<128x128xf32>, vector<32x128xf32> -> vector<32x128xf32>
    %111 = arith.addf %107, %110 : vector<32x128xf32>
    %cst_48 = arith.constant 0.000000e+00 : f32
    %112 = vector.broadcast %cst_48 : f32 to vector<32x128xf32>
    %113 = arith.cmpf ogt, %111, %112 : vector<32x128xf32>
    %cst_49 = arith.constant 0.00999999977 : f32
    %114 = vector.broadcast %cst_49 : f32 to vector<32x128xf32>
    %115 = arith.mulf %114, %111 : vector<32x128xf32>
    %116 = arith.select %113, %111, %115 : vector<32x128xi1>, vector<32x128xf32>
    %cst_50 = arith.constant dense<0.000000e+00> : vector<128xf32>
    %117 = vector.multi_reduction <add>, %116, %cst_50 [0] : vector<32x128xf32> to vector<128xf32>
    %118 = vector.shape_cast %117 : vector<128xf32> to vector<1x128xf32>
    %119 = arith.mulf %116, %116 : vector<32x128xf32>
    %cst_51 = arith.constant dense<0.000000e+00> : vector<128xf32>
    %120 = vector.multi_reduction <add>, %119, %cst_51 [0] : vector<32x128xf32> to vector<128xf32>
    %121 = vector.shape_cast %120 : vector<128xf32> to vector<1x128xf32>
    %122 = tpu.concatenate %118, %121 in 0 : vector<1x128xf32>, vector<1x128xf32> -> vector<2x128xf32>
    %c8_i32_52 = arith.constant 8 : i32
    %123 = tpu.dynamic_rotate %122 by %c8_i32_52 dim 1 : vector<2x128xf32>, i32 -> vector<2x128xf32>
    %124 = arith.addf %122, %123 : vector<2x128xf32>
    %c16_i32_53 = arith.constant 16 : i32
    %125 = tpu.dynamic_rotate %124 by %c16_i32_53 dim 1 : vector<2x128xf32>, i32 -> vector<2x128xf32>
    %126 = arith.addf %124, %125 : vector<2x128xf32>
    %c32_i32_54 = arith.constant 32 : i32
    %127 = tpu.dynamic_rotate %126 by %c32_i32_54 dim 1 : vector<2x128xf32>, i32 -> vector<2x128xf32>
    %128 = arith.addf %126, %127 : vector<2x128xf32>
    %c64_i32_55 = arith.constant 64 : i32
    %129 = tpu.dynamic_rotate %128 by %c64_i32_55 dim 1 : vector<2x128xf32>, i32 -> vector<2x128xf32>
    %130 = arith.addf %128, %129 : vector<2x128xf32>
    %131 = vector.extract_strided_slice %130 {offsets = [0, 0], sizes = [1, 128], strides = [1, 1]} : vector<2x128xf32> to vector<1x128xf32>
    %cst_56 = arith.constant 0.001953125 : f32
    %132 = vector.broadcast %cst_56 : f32 to vector<1x128xf32>
    %133 = arith.mulf %131, %132 : vector<1x128xf32>
    %134 = vector.extract_strided_slice %130 {offsets = [1, 0], sizes = [1, 128], strides = [1, 1]} : vector<2x128xf32> to vector<1x128xf32>
    %cst_57 = arith.constant 0.001953125 : f32
    %135 = vector.broadcast %cst_57 : f32 to vector<1x128xf32>
    %136 = arith.mulf %134, %135 : vector<1x128xf32>
    %137 = arith.mulf %133, %133 : vector<1x128xf32>
    %138 = arith.subf %136, %137 : vector<1x128xf32>
    %cst_58 = arith.constant 9.99999974E-6 : f32
    %139 = vector.broadcast %cst_58 : f32 to vector<1x128xf32>
    %140 = arith.addf %138, %139 : vector<1x128xf32>
    %141 = math.rsqrt %140 : vector<1x128xf32>
    %142 = arith.mulf %24, %141 : vector<1x128xf32>
    %143 = vector.broadcast %133 : vector<1x128xf32> to vector<32x128xf32>
    %144 = arith.subf %116, %143 : vector<32x128xf32>
    %145 = vector.broadcast %142 : vector<1x128xf32> to vector<32x128xf32>
    %146 = arith.mulf %144, %145 : vector<32x128xf32>
    %147 = vector.broadcast %25 : vector<1x128xf32> to vector<32x128xf32>
    %148 = arith.addf %146, %147 : vector<32x128xf32>
    %c0_59 = arith.constant 0 : index
    %c0_60 = arith.constant 0 : index
    %149 = vector.load %arg3[%c0_59, %c0_60] : memref<64x128xf32, #tpu.memory_space<vmem>>, vector<64x128xf32>
    %cst_61 = arith.constant dense<0.000000e+00> : vector<32x128xf32>
    %150 = tpu.matmul %0, %149, %cst_61 {dimension_numbers = #tpu.dot_dimension_numbers<[1], [0], [0], [1], [0, 0, 1, 1], [], []>} : vector<32x64xf32>, vector<64x128xf32>, vector<32x128xf32> -> vector<32x128xf32>
    %151 = vector.broadcast %26 : vector<1x128xf32> to vector<32x128xf32>
    %152 = arith.addf %150, %151 : vector<32x128xf32>
    %153 = arith.addf %148, %152 : vector<32x128xf32>
    %cst_62 = arith.constant 0.000000e+00 : f32
    %154 = vector.broadcast %cst_62 : f32 to vector<32x128xf32>
    %155 = arith.cmpf ogt, %153, %154 : vector<32x128xf32>
    %cst_63 = arith.constant 0.00999999977 : f32
    %156 = vector.broadcast %cst_63 : f32 to vector<32x128xf32>
    %157 = arith.mulf %156, %153 : vector<32x128xf32>
    %158 = arith.select %155, %153, %157 : vector<32x128xi1>, vector<32x128xf32>
    %c0_64 = arith.constant 0 : index
    %c0_65 = arith.constant 0 : index
    %159 = vector.load %arg5[%c0_64, %c0_65] : memref<32x128xf32, #tpu.memory_space<vmem>>, vector<32x128xf32>
    tpu.vector_store %arg5[%c0_64, %c0_65], %158 {strides = array<i32>} : memref<32x128xf32, #tpu.memory_space<vmem>>, vector<32x128xf32>,
    return
  }
}

</mosaic_0001>

<llo_original>
// kernel: tpu_custom_call.1
$region0: #{tpu_custom_call.1}
  #allocation0 [shape = 'u32[]', space=smem, size = 0x4, offset = 0x4, fixed_abs, tag = 'smem constant byte address 0x4 - core index']
  #allocation1 [shape = 'u32[144,128]{1,0:T(1,128)}', space=vmem, size = 0x12000, scoped, tag = 'internal scratch']
  %s0 = inlined_call_operand.hbm [shape: f32[32,64], index: 0, kind: input, shape index: {}]
  %s1 = inlined_call_operand.hbm [shape: f32[3,64,128], index: 1, kind: input, shape index: {}]
  %s2 = inlined_call_operand.hbm [shape: f32[3,128,128], index: 2, kind: input, shape index: {}]
  %s3 = inlined_call_operand.hbm [shape: f32[64,128], index: 3, kind: input, shape index: {}]
  %s4 = inlined_call_operand.vmem [shape: f32[5,128], index: 4, kind: input, shape index: {}]
  %s5 = inlined_call_operand.hbm [shape: f32[32,128], index: 5, kind: output, shape index: {}]
  %s6 = sld [smem:[#allocation0]]
  $region46: #{tpu_custom_call.1} parent=0
    _
  %s8 = ssub.s32 1, %s6
  %s9 = scalar_select 0, %s8, %s6
  $region1: #{tpu_custom_call.1} parent=0
    #allocation2 [shape = 'u8[16384]{0}', space=vmem, size = 0x4000, scoped, tag = 'input window, operand 0, single buffered']
    #allocation3 [shape = 's32[1]{0}', space=sflag, size = 0x4, scoped, tag = 'scoped memory for tpu_custom_call.1']
    #allocation4 [shape = 's32[1]{0}', space=sflag, size = 0x4, scoped, tag = 'scoped memory for tpu_custom_call.1']
    #allocation5 [shape = 'u8[98304]{0}', space=vmem, size = 0x18000, scoped, tag = 'input window, operand 1, single buffered']
    #allocation6 [shape = 's32[1]{0}', space=sflag, size = 0x4, scoped, tag = 'scoped memory for tpu_custom_call.1']
    #allocation7 [shape = 'u8[196608]{0}', space=vmem, size = 0x30000, scoped, tag = 'input window, operand 2, single buffered']
    #allocation8 [shape = 'u8[32768]{0}', space=vmem, size = 0x8000, scoped, tag = 'input window, operand 3, single buffered']
    #allocation9 [shape = 's32[1]{0}', space=sflag, size = 0x4, scoped, tag = 'scoped memory for tpu_custom_call.1']
    #allocation10 [shape = 'u8[16384]{0}', space=vmem, size = 0x4000, scoped, tag = 'output window, operand 0, single buffered']
    %10 = vsyncpa [#allocation3], 0
    %11 = vsyncpa [#allocation6], 0
    %12 = vsyncpa [#allocation9], 0
    %13 = vsyncpa [#allocation4], 0
    // Predicated region
    $region2: #{tpu_custom_call.1} parent=1 // pred_check
      _
    $region3: #{tpu_custom_call.1} parent=1 // pred_check_branch
      %15 = sbr.rel (0) target = $region5
    $region4: #{tpu_custom_call.1} parent=1 // pred_region
      %s17 = ssub.s32 512, 512
      %18 = vsyncadd [#allocation3], %s17
      %s19 = sshll.u32 [#allocation2], 4
      %s20 = int_to_ptr.vmem [resolvable:$true] %s19
      %25 = dma.hbm_to_vmem [thread:$0]  %s0, 512, %s20, [#allocation3], 128, 128, 8
    $region5: #{tpu_custom_call.1} parent=1 // pred_fallthru
      _
    // Predicated region
    $region6: #{tpu_custom_call.1} parent=1 // pred_check
      _
    $region7: #{tpu_custom_call.1} parent=1 // pred_check_branch
      %27 = sbr.rel (0) target = $region9
    $region8: #{tpu_custom_call.1} parent=1 // pred_region
      %s29 = ssub.s32 3072, 3072
      %30 = vsyncadd [#allocation6], %s29
      %s31 = sshll.u32 [#allocation5], 4
      %s32 = int_to_ptr.vmem [resolvable:$true] %s31
      %37 = dma.hbm_to_vmem [thread:$0]  %s1, 3072, %s32, [#allocation6], 128, 128, 8
    $region9: #{tpu_custom_call.1} parent=1 // pred_fallthru
      _
    // Predicated region
    $region10: #{tpu_custom_call.1} parent=1 // pred_check
      _
    $region11: #{tpu_custom_call.1} parent=1 // pred_check_branch
      %39 = sbr.rel (0) target = $region13
    $region12: #{tpu_custom_call.1} parent=1 // pred_region
      %s41 = ssub.s32 6144, 6144
      %42 = vsyncadd [#allocation6], %s41
      %s43 = sshll.u32 [#allocation7], 4
      %s44 = int_to_ptr.vmem [resolvable:$true] %s43
      %49 = dma.hbm_to_vmem [thread:$0]  %s2, 6144, %s44, [#allocation6], 128, 128, 8
    $region13: #{tpu_custom_call.1} parent=1 // pred_fallthru
      _
    // Predicated region
    $region14: #{tpu_custom_call.1} parent=1 // pred_check
      _
    $region15: #{tpu_custom_call.1} parent=1 // pred_check_branch
      %51 = sbr.rel (0) target = $region17
    $region16: #{tpu_custom_call.1} parent=1 // pred_region
      %s53 = ssub.s32 1024, 1024
      %54 = vsyncadd [#allocation9], %s53
      %s55 = sshll.u32 [#allocation8], 4
      %s56 = int_to_ptr.vmem [resolvable:$true] %s55
      %61 = dma.hbm_to_vmem [thread:$0]  %s3, 1024, %s56, [#allocation9], 128, 128, 8
    $region17: #{tpu_custom_call.1} parent=1 // pred_fallthru
      _
    // Predicated region
    $region18: #{tpu_custom_call.1} parent=1 // pred_check
      _
    $region19: #{tpu_custom_call.1} parent=1 // pred_check_branch
      %63 = sbr.rel (0) target = $region21
    $region20: #{tpu_custom_call.1} parent=1 // pred_region
      _
    $region21: #{tpu_custom_call.1} parent=1 // pred_fallthru
      _
    // Predicated region
    $region22: #{tpu_custom_call.1} parent=1 // pred_check
      _
    $region23: #{tpu_custom_call.1} parent=1 // pred_check_branch
      %65 = sbr.rel (0) target = $region25
    $region24: #{tpu_custom_call.1} parent=1 // pred_region
      %66 = dma.done [#allocation3], 512
    $region25: #{tpu_custom_call.1} parent=1 // pred_fallthru
      _
    // Predicated region
    $region26: #{tpu_custom_call.1} parent=1 // pred_check
      _
    $region27: #{tpu_custom_call.1} parent=1 // pred_check_branch
      %68 = sbr.rel (0) target = $region29
    $region28: #{tpu_custom_call.1} parent=1 // pred_region
      %69 = dma.done [#allocation6], 3072
    $region29: #{tpu_custom_call.1} parent=1 // pred_fallthru
      _
    // Predicated region
    $region30: #{tpu_custom_call.1} parent=1 // pred_check
      _
    $region31: #{tpu_custom_call.1} parent=1 // pred_check_branch
      %71 = sbr.rel (0) target = $region33
    $region32: #{tpu_custom_call.1} parent=1 // pred_region
      %72 = dma.done [#allocation6], 6144
    $region33: #{tpu_custom_call.1} parent=1 // pred_fallthru
      _
    // Predicated region
    $region34: #{tpu_custom_call.1} parent=1 // pred_check
      _
    $region35: #{tpu_custom_call.1} parent=1 // pred_check_branch
      %74 = sbr.rel (0) target = $region37
    $region36: #{tpu_custom_call.1} parent=1 // pred_region
      %75 = dma.done [#allocation9], 1024
    $region37: #{tpu_custom_call.1} parent=1 // pred_fallthru
      _
    %v76 = vld [vmem:[#allocation2] sm:$0xff]
    %v77 = vld [vmem:[#allocation2 + $0x8] sm:$0xff]
    %v78 = vld [vmem:[#allocation2 + $0x10] sm:$0xff]
    %v79 = vld [vmem:[#allocation2 + $0x18] sm:$0xff]
    %v80 = vlaneseq
    %v81 = vshrl.u32 %v80, 7
    %v82 = vadd.s32 %v81, 8
    %v83 = vadd.s32 %v81, 16
    %v84 = vadd.s32 %v81, 24
    %vm85 = vcmp.lt.s32.totalorder %v81, 0
    %v86 = vsub.s32 0, %v81
    %v87 = vsel %vm85, %v86, %v81
    %v88 = vshrl.u32 %v87, 4
    %v89 = vand.u32 %v87, 15
    %v90 = vsub.s32 0, %v89
    %v91 = vsel %vm85, %v90, %v89
    %vm92 = vcmp.lt.s32.totalorder %v82, 0
    %v93 = vsub.s32 0, %v82
    %v94 = vsel %vm92, %v93, %v82
    %v95 = vshrl.u32 %v94, 4
    %v96 = vand.u32 %v94, 15
    %v97 = vsub.s32 0, %v96
    %v98 = vsel %vm92, %v97, %v96
    %vm99 = vcmp.lt.s32.totalorder %v83, 0
    %v100 = vsub.s32 0, %v83
    %v101 = vsel %vm99, %v100, %v83
    %v102 = vshrl.u32 %v101, 4
    %v103 = vand.u32 %v101, 15
    %v104 = vsub.s32 0, %v103
    %v105 = vsel %vm99, %v104, %v103
    %vm106 = vcmp.lt.s32.totalorder %v84, 0
    %v107 = vsub.s32 0, %v84
    %v108 = vsel %vm106, %v107, %v84
    %v109 = vshrl.u32 %v108, 4
    %v110 = vand.u32 %v108, 15
    %v111 = vsub.s32 0, %v110
    %v112 = vsel %vm106, %v111, %v110
    %vm113 = vcmp.ne.s32.totalorder %v91, 0
    %vm114 = vcmp.ne.s32.totalorder %v98, 0
    %vm115 = vcmp.ne.s32.totalorder %v105, 0
    %vm116 = vcmp.ne.s32.totalorder %v112, 0
    %vm117 = vcmp.lt.s32.totalorder %v91, 0
    %vm118 = vcmp.lt.s32.totalorder %v98, 0
    %vm119 = vcmp.lt.s32.totalorder %v105, 0
    %vm120 = vcmp.lt.s32.totalorder %v112, 0
    %vm121 = vmand %vm117, %vm113
    %vm122 = vmand %vm118, %vm114
    %vm123 = vmand %vm119, %vm115
    %vm124 = vmand %vm120, %vm116
    %v125 = vadd.s32 %v91, 16
    %v126 = vadd.s32 %v98, 16
    %v127 = vadd.s32 %v105, 16
    %v128 = vadd.s32 %v112, 16
    %v129 = vsel %vm121, %v125, %v91
    %v130 = vsel %vm122, %v126, %v98
    %v131 = vsel %vm123, %v127, %v105
    %v132 = vsel %vm124, %v128, %v112
    %vm133 = vcmp.eq.s32.totalorder %v129, 0
    %vm134 = vcmp.eq.s32.totalorder %v130, 0
    %vm135 = vcmp.eq.s32.totalorder %v131, 0
    %vm136 = vcmp.eq.s32.totalorder %v132, 0
    %vm137 = vcmp.eq.s32.totalorder %v129, 15
    %vm138 = vcmp.eq.s32.totalorder %v130, 15
    %vm139 = vcmp.eq.s32.totalorder %v131, 15
    %vm140 = vcmp.eq.s32.totalorder %v132, 15
    %v141 = vld [vmem:[%s4] sm:$0x1]
    %v142 = vld [vmem:[%s4 + $0x1] sm:$0x1]
    %v143 = vld [vmem:[%s4 + $0x2] sm:$0x1]
    %v144 = vld [vmem:[%s4 + $0x3] sm:$0x1]
    %v145 = vld [vmem:[%s4 + $0x4] sm:$0x1]
    %vm150 = vcmask 1040384
    %v151 = vrot.slane %v76, 7
    %v152 = vrot.slane %v77, 7
    %v153 = vsel %vm150, %v151, %v152
    %v154 = vrot.slane %v78, 7
    %v155 = vsel %vm150, %v152, %v154
    %v156 = vrot.slane %v79, 7
    %v157 = vsel %vm150, %v154, %v156
    %v162 = vsel %vm150, 0.0, %v151
    %v163 = vsel %vm133, 1, 0
    %v164 = vsel %vm134, 1, 0
    %v165 = vsel %vm135, 1, 0
    %v166 = vsel %vm136, 1, 0
    %vm167 = vcmp.eq.s32.totalorder %v163, 1
    %vm168 = vcmp.eq.s32.totalorder %v164, 1
    %vm169 = vcmp.eq.s32.totalorder %v165, 1
    %vm170 = vcmp.eq.s32.totalorder %v166, 1
    %v171 = vsel %vm167, 0.0, %v162
    %v172 = vsel %vm168, 0.0, %v153
    %v173 = vsel %vm169, 0.0, %v155
    %v174 = vsel %vm170, 0.0, %v157
    %vm175 = vcmask 1046528
    %v176 = vrot.slane %v76, 1
    %v177 = vrot.slane %v77, 1
    %v178 = vsel %vm175, %v176, %v177
    %v179 = vrot.slane %v78, 1
    %v180 = vsel %vm175, %v177, %v179
    %v181 = vrot.slane %v79, 1
    %v182 = vsel %vm175, %v179, %v181
    %v187 = vsel %vm175, %v181, 0.0
    %v188 = vsel %vm137, 1, 0
    %v189 = vsel %vm138, 1, 0
    %v190 = vsel %vm139, 1, 0
    %v191 = vsel %vm140, 1, 0
    %vm192 = vcmp.eq.s32.totalorder %v188, 1
    %vm193 = vcmp.eq.s32.totalorder %v189, 1
    %vm194 = vcmp.eq.s32.totalorder %v190, 1
    %vm195 = vcmp.eq.s32.totalorder %v191, 1
    %v196 = vsel %vm192, 0.0, %v178
    %v197 = vsel %vm193, 0.0, %v180
    %v198 = vsel %vm194, 0.0, %v182
    %v199 = vsel %vm195, 0.0, %v187
    %v200 = vld [vmem:[#allocation5] sm:$0xff]
    %v201 = vld [vmem:[#allocation5 + $0x8] sm:$0xff]
    %v202 = vld [vmem:[#allocation5 + $0x10] sm:$0xff]
    %v203 = vld [vmem:[#allocation5 + $0x18] sm:$0xff]
    %v204 = vld [vmem:[#allocation5 + $0x20] sm:$0xff]
    %v205 = vld [vmem:[#allocation5 + $0x28] sm:$0xff]
    %v206 = vld [vmem:[#allocation5 + $0x30] sm:$0xff]
    %v207 = vld [vmem:[#allocation5 + $0x38] sm:$0xff]
    %s208 = scalar_lea.vmem [#allocation5], 64
    %v209 = vld [vmem:[%s208] sm:$0xff]
    %v210 = vld [vmem:[%s208 + $0x8] sm:$0xff]
    %v211 = vld [vmem:[%s208 + $0x10] sm:$0xff]
    %v212 = vld [vmem:[%s208 + $0x18] sm:$0xff]
    %v213 = vld [vmem:[%s208 + $0x20] sm:$0xff]
    %v214 = vld [vmem:[%s208 + $0x28] sm:$0xff]
    %v215 = vld [vmem:[%s208 + $0x30] sm:$0xff]
    %v216 = vld [vmem:[%s208 + $0x38] sm:$0xff]
    %vm217 = vcmask 523264
    %v218 = vsel %vm217, %v76, 0
    %v220 = vsel %vm217, %v77, 0
    %v222 = vsel %vm217, %v78, 0
    %v224 = vsel %vm217, %v79, 0
    %226 = vmatprep.subr.mxu0 0.0
    %227 = vmatpush1.msra.mxu0 %v209
    %228 = vmatprep.subr.mxu0 0.0
    %229 = vmatpush1.msra.mxu0 %v210
    %230 = vmatprep.subr.mxu0 0.0
    %231 = vmatpush1.msra.mxu0 %v211
    %232 = vmatprep.subr.mxu0 0.0
    %233 = vmatpush1.msra.mxu0 %v212
    %234 = vmatprep.subr.mxu0 0.0
    %235 = vmatpush1.msra.mxu0 %v213
    %236 = vmatprep.subr.mxu0 0.0
    %237 = vmatpush1.msra.mxu0 %v214
    %238 = vmatprep.subr.mxu0 0.0
    %239 = vmatpush1.msra.mxu0 %v215
    %240 = vmatprep.subr.mxu0 0.0
    %241 = vmatpush1.msra.mxu0 %v216
    %242 = vmatprep.subr.mxu0 0.0
    %243 = vmatpush1.msra.mxu0 0.0
    %244 = vmatprep.subr.mxu0 0.0
    %245 = vmatpush1.msra.mxu0 0.0
    %246 = vmatprep.subr.mxu0 0.0
    %247 = vmatpush1.msra.mxu0 0.0
    %248 = vmatprep.subr.mxu0 0.0
    %249 = vmatpush1.msra.mxu0 0.0
    %250 = vmatprep.subr.mxu0 0.0
    %251 = vmatpush1.msra.mxu0 0.0
    %252 = vmatprep.subr.mxu0 0.0
    %253 = vmatpush1.msra.mxu0 0.0
    %254 = vmatprep.subr.mxu0 0.0
    %255 = vmatpush1.msra.mxu0 0.0
    %256 = vmatprep.subr.mxu0 0.0
    %257 = vmatpush1.msra.mxu0 0.0
    %258 = vmatprep.subr.mxu0 0.0
    %259 = vmatpush1.msra.mxu0 0.0
    %260 = vmatprep.subr.mxu0 0.0
    %261 = vmatpush1.msra.mxu0 0.0
    %262 = vmatprep.subr.mxu0 0.0
    %263 = vmatpush1.msra.mxu0 0.0
    %264 = vmatprep.subr.mxu0 0.0
    %265 = vmatpush1.msra.mxu0 0.0
    %266 = vmatprep.subr.mxu0 0.0
    %267 = vmatpush1.msra.mxu0 0.0
    %268 = vmatprep.subr.mxu0 0.0
    %269 = vmatpush1.msra.mxu0 0.0
    %270 = vmatprep.subr.mxu0 0.0
    %271 = vmatpush1.msra.mxu0 0.0
    %272 = vmatprep.subr.mxu0 0.0
    %273 = vmatpush1.msra.mxu0 0.0
    %274 = vmatprep.subr.mxu0 0.0
    %275 = vmatpush1.msra.mxu0 0.0
    %276 = vmatprep.subr.mxu0 0.0
    %277 = vmatpush1.msra.mxu0 0.0
    %278 = vmatprep.subr.mxu0 0.0
    %279 = vmatpush1.msra.mxu0 0.0
    %280 = vmatprep.subr.mxu0 0.0
    %281 = vmatpush1.msra.mxu0 0.0
    %282 = vmatprep.subr.mxu0 0.0
    %283 = vmatpush1.msra.mxu0 0.0
    %284 = vmatprep.subr.mxu0 0.0
    %285 = vmatpush1.msra.mxu0 0.0
    %286 = vmatprep.subr.mxu0 0.0
    %287 = vmatpush1.msra.mxu0 0.0
    %288 = vmatprep.subr.mxu0 0.0
    %289 = vmatpush1.msra.mxu0 0.0
    %290 = vmatprep.mubr.f32.mxu0 0.0
    %291 = vmatmul.mubr.f32.gmra.mrb[0].mxu0 %v218
    %v292 = vpop.f32.mrb[0].mxu0
    %v293 = vadd.f32 0.0, %v292
    %v294 = vpop.f32.mrb[0].mxu0
    %295 = vmatprep.mubr.f32.mxu0 0.0
    %296 = vmatmul.mubr.f32.gmra.mrb[0].mxu0 %v220
    %v297 = vpop.f32.mrb[0].mxu0
    %v298 = vadd.f32 0.0, %v297
    %v299 = vpop.f32.mrb[0].mxu0
    %300 = vmatprep.mubr.f32.mxu0 0.0
    %301 = vmatmul.mubr.f32.gmra.mrb[0].mxu0 %v222
    %v302 = vpop.f32.mrb[0].mxu0
    %v303 = vadd.f32 0.0, %v302
    %v304 = vpop.f32.mrb[0].mxu0
    %305 = vmatprep.mubr.f32.mxu0 0.0
    %306 = vmatmul.mubr.f32.gmra.mrb[0].mxu0 %v224
    %v307 = vpop.f32.mrb[0].mxu0
    %v308 = vadd.f32 0.0, %v307
    %v309 = vpop.f32.mrb[0].mxu0
    %310 = vdwg.mxu0
    %v312 = vsel %vm217, %v171, 0
    %v315 = vsel %vm217, %v172, 0
    %v318 = vsel %vm217, %v173, 0
    %v321 = vsel %vm217, %v174, 0
    %323 = vmatprep.subr.mxu0 0.0
    %324 = vmatpush1.msra.mxu0 %v200
    %325 = vmatprep.subr.mxu0 0.0
    %326 = vmatpush1.msra.mxu0 %v201
    %327 = vmatprep.subr.mxu0 0.0
    %328 = vmatpush1.msra.mxu0 %v202
    %329 = vmatprep.subr.mxu0 0.0
    %330 = vmatpush1.msra.mxu0 %v203
    %331 = vmatprep.subr.mxu0 0.0
    %332 = vmatpush1.msra.mxu0 %v204
    %333 = vmatprep.subr.mxu0 0.0
    %334 = vmatpush1.msra.mxu0 %v205
    %335 = vmatprep.subr.mxu0 0.0
    %336 = vmatpush1.msra.mxu0 %v206
    %337 = vmatprep.subr.mxu0 0.0
    %338 = vmatpush1.msra.mxu0 %v207
    %339 = vmatprep.subr.mxu0 0.0
    %340 = vmatpush1.msra.mxu0 0.0
    %341 = vmatprep.subr.mxu0 0.0
    %342 = vmatpush1.msra.mxu0 0.0
    %343 = vmatprep.subr.mxu0 0.0
    %344 = vmatpush1.msra.mxu0 0.0
    %345 = vmatprep.subr.mxu0 0.0
    %346 = vmatpush1.msra.mxu0 0.0
    %347 = vmatprep.subr.mxu0 0.0
    %348 = vmatpush1.msra.mxu0 0.0
    %349 = vmatprep.subr.mxu0 0.0
    %350 = vmatpush1.msra.mxu0 0.0
    %351 = vmatprep.subr.mxu0 0.0
    %352 = vmatpush1.msra.mxu0 0.0
    %353 = vmatprep.subr.mxu0 0.0
    %354 = vmatpush1.msra.mxu0 0.0
    %355 = vmatprep.subr.mxu0 0.0
    %356 = vmatpush1.msra.mxu0 0.0
    %357 = vmatprep.subr.mxu0 0.0
    %358 = vmatpush1.msra.mxu0 0.0
    %359 = vmatprep.subr.mxu0 0.0
    %360 = vmatpush1.msra.mxu0 0.0
    %361 = vmatprep.subr.mxu0 0.0
    %362 = vmatpush1.msra.mxu0 0.0
    %363 = vmatprep.subr.mxu0 0.0
    %364 = vmatpush1.msra.mxu0 0.0
    %365 = vmatprep.subr.mxu0 0.0
    %366 = vmatpush1.msra.mxu0 0.0
    %367 = vmatprep.subr.mxu0 0.0
    %368 = vmatpush1.msra.mxu0 0.0
    %369 = vmatprep.subr.mxu0 0.0
    %370 = vmatpush1.msra.mxu0 0.0
    %371 = vmatprep.subr.mxu0 0.0
    %372 = vmatpush1.msra.mxu0 0.0
    %373 = vmatprep.subr.mxu0 0.0
    %374 = vmatpush1.msra.mxu0 0.0
    %375 = vmatprep.subr.mxu0 0.0
    %376 = vmatpush1.msra.mxu0 0.0
    %377 = vmatprep.subr.mxu0 0.0
    %378 = vmatpush1.msra.mxu0 0.0
    %379 = vmatprep.subr.mxu0 0.0
    %380 = vmatpush1.msra.mxu0 0.0
    %381 = vmatprep.subr.mxu0 0.0
    %382 = vmatpush1.msra.mxu0 0.0
    %383 = vmatprep.subr.mxu0 0.0
    %384 = vmatpush1.msra.mxu0 0.0
    %385 = vmatprep.subr.mxu0 0.0
    %386 = vmatpush1.msra.mxu0 0.0
    %387 = vmatprep.mubr.f32.mxu0 0.0
    %388 = vmatmul.mubr.f32.gmra.mrb[0].mxu0 %v312
    %v389 = vpop.f32.mrb[0].mxu0
    %v390 = vadd.f32 %v293, %v389
    %v391 = vpop.f32.mrb[0].mxu0
    %392 = vmatprep.mubr.f32.mxu0 0.0
    %393 = vmatmul.mubr.f32.gmra.mrb[0].mxu0 %v315
    %v394 = vpop.f32.mrb[0].mxu0
    %v395 = vadd.f32 %v298, %v394
    %v396 = vpop.f32.mrb[0].mxu0
    %397 = vmatprep.mubr.f32.mxu0 0.0
    %398 = vmatmul.mubr.f32.gmra.mrb[0].mxu0 %v318
    %v399 = vpop.f32.mrb[0].mxu0
    %v400 = vadd.f32 %v303, %v399
    %v401 = vpop.f32.mrb[0].mxu0
    %402 = vmatprep.mubr.f32.mxu0 0.0
    %403 = vmatmul.mubr.f32.gmra.mrb[0].mxu0 %v321
    %v404 = vpop.f32.mrb[0].mxu0
    %v405 = vadd.f32 %v308, %v404
    %v406 = vpop.f32.mrb[0].mxu0
    %407 = vdwg.mxu0
    %s408 = scalar_lea.vmem [#allocation5], 128
    %v409 = vld [vmem:[%s408] sm:$0xff]
    %v410 = vld [vmem:[%s408 + $0x8] sm:$0xff]
    %v411 = vld [vmem:[%s408 + $0x10] sm:$0xff]
    %v412 = vld [vmem:[%s408 + $0x18] sm:$0xff]
    %v413 = vld [vmem:[%s408 + $0x20] sm:$0xff]
    %v414 = vld [vmem:[%s408 + $0x28] sm:$0xff]
    %v415 = vld [vmem:[%s408 + $0x30] sm:$0xff]
    %v416 = vld [vmem:[%s408 + $0x38] sm:$0xff]
    %v418 = vsel %vm217, %v196, 0
    %v421 = vsel %vm217, %v197, 0
    %v424 = vsel %vm217, %v198, 0
    %v427 = vsel %vm217, %v199, 0
    %429 = vmatprep.subr.mxu0 0.0
    %430 = vmatpush1.msra.mxu0 %v409
    %431 = vmatprep.subr.mxu0 0.0
    %432 = vmatpush1.msra.mxu0 %v410
    %433 = vmatprep.subr.mxu0 0.0
    %434 = vmatpush1.msra.mxu0 %v411
    %435 = vmatprep.subr.mxu0 0.0
    %436 = vmatpush1.msra.mxu0 %v412
    %437 = vmatprep.subr.mxu0 0.0
    %438 = vmatpush1.msra.mxu0 %v413
    %439 = vmatprep.subr.mxu0 0.0
    %440 = vmatpush1.msra.mxu0 %v414
    %441 = vmatprep.subr.mxu0 0.0
    %442 = vmatpush1.msra.mxu0 %v415
    %443 = vmatprep.subr.mxu0 0.0
    %444 = vmatpush1.msra.mxu0 %v416
    %445 = vmatprep.subr.mxu0 0.0
    %446 = vmatpush1.msra.mxu0 0.0
    %447 = vmatprep.subr.mxu0 0.0
    %448 = vmatpush1.msra.mxu0 0.0
    %449 = vmatprep.subr.mxu0 0.0
    %450 = vmatpush1.msra.mxu0 0.0
    %451 = vmatprep.subr.mxu0 0.0
    %452 = vmatpush1.msra.mxu0 0.0
    %453 = vmatprep.subr.mxu0 0.0
    %454 = vmatpush1.msra.mxu0 0.0
    %455 = vmatprep.subr.mxu0 0.0
    %456 = vmatpush1.msra.mxu0 0.0
    %457 = vmatprep.subr.mxu0 0.0
    %458 = vmatpush1.msra.mxu0 0.0
    %459 = vmatprep.subr.mxu0 0.0
    %460 = vmatpush1.msra.mxu0 0.0
    %461 = vmatprep.subr.mxu0 0.0
    %462 = vmatpush1.msra.mxu0 0.0
    %463 = vmatprep.subr.mxu0 0.0
    %464 = vmatpush1.msra.mxu0 0.0
    %465 = vmatprep.subr.mxu0 0.0
    %466 = vmatpush1.msra.mxu0 0.0
    %467 = vmatprep.subr.mxu0 0.0
    %468 = vmatpush1.msra.mxu0 0.0
    %469 = vmatprep.subr.mxu0 0.0
    %470 = vmatpush1.msra.mxu0 0.0
    %471 = vmatprep.subr.mxu0 0.0
    %472 = vmatpush1.msra.mxu0 0.0
    %473 = vmatprep.subr.mxu0 0.0
    %474 = vmatpush1.msra.mxu0 0.0
    %475 = vmatprep.subr.mxu0 0.0
    %476 = vmatpush1.msra.mxu0 0.0
    %477 = vmatprep.subr.mxu0 0.0
    %478 = vmatpush1.msra.mxu0 0.0
    %479 = vmatprep.subr.mxu0 0.0
    %480 = vmatpush1.msra.mxu0 0.0
    %481 = vmatprep.subr.mxu0 0.0
    %482 = vmatpush1.msra.mxu0 0.0
    %483 = vmatprep.subr.mxu0 0.0
    %484 = vmatpush1.msra.mxu0 0.0
    %485 = vmatprep.subr.mxu0 0.0
    %486 = vmatpush1.msra.mxu0 0.0
    %487 = vmatprep.subr.mxu0 0.0
    %488 = vmatpush1.msra.mxu0 0.0
    %489 = vmatprep.subr.mxu0 0.0
    %490 = vmatpush1.msra.mxu0 0.0
    %491 = vmatprep.subr.mxu0 0.0
    %492 = vmatpush1.msra.mxu0 0.0
    %493 = vmatprep.mubr.f32.mxu0 0.0
    %494 = vmatmul.mubr.f32.gmra.mrb[0].mxu0 %v418
    %v495 = vpop.f32.mrb[0].mxu0
    %v496 = vadd.f32 0.0, %v495
    %v497 = vpop.f32.mrb[0].mxu0
    %498 = vmatprep.mubr.f32.mxu0 0.0
    %499 = vmatmul.mubr.f32.gmra.mrb[0].mxu0 %v421
    %v500 = vpop.f32.mrb[0].mxu0
    %v501 = vadd.f32 0.0, %v500
    %v502 = vpop.f32.mrb[0].mxu0
    %503 = vmatprep.mubr.f32.mxu0 0.0
    %504 = vmatmul.mubr.f32.gmra.mrb[0].mxu0 %v424
    %v505 = vpop.f32.mrb[0].mxu0
    %v506 = vadd.f32 0.0, %v505
    %v507 = vpop.f32.mrb[0].mxu0
    %508 = vmatprep.mubr.f32.mxu0 0.0
    %509 = vmatmul.mubr.f32.gmra.mrb[0].mxu0 %v427
    %v510 = vpop.f32.mrb[0].mxu0
    %v511 = vadd.f32 0.0, %v510
    %v512 = vpop.f32.mrb[0].mxu0
    %513 = vdwg.mxu0
    %v514 = vadd.f32 %v390, %v496
    %v515 = vadd.f32 %v395, %v501
    %v516 = vadd.f32 %v400, %v506
    %v517 = vadd.f32 %v405, %v511
    %vm518 = vcmp.gt.f32.partialorder %v514, 0.0
    %vm519 = vcmp.gt.f32.partialorder %v515, 0.0
    %vm520 = vcmp.gt.f32.partialorder %v516, 0.0
    %vm521 = vcmp.gt.f32.partialorder %v517, 0.0
    %v522 = vmul.f32 %v514, 0.01
    %v523 = vmul.f32 %v515, 0.01
    %v524 = vmul.f32 %v516, 0.01
    %v525 = vmul.f32 %v517, 0.01
    %v526 = vsel %vm518, %v514, %v522
    %v527 = vsel %vm519, %v515, %v523
    %v528 = vsel %vm520, %v516, %v524
    %v529 = vsel %vm521, %v517, %v525
    %v530 = vadd.f32 %v526, %v527
    %v531 = vadd.f32 %v530, %v528
    %v532 = vadd.f32 %v531, %v529
    %v533 = vrot.slane %v532, 4
    %v534 = vadd.f32 %v532, %v533
    %v535 = vrot.slane %v534, 2
    %v536 = vadd.f32 %v534, %v535
    %v537 = vrot.slane %v536, 1
    %v538 = vadd.f32 %v536, %v537
    %v539 = vmul.f32 %v526, %v526
    %v540 = vmul.f32 %v527, %v527
    %v541 = vmul.f32 %v528, %v528
    %v542 = vmul.f32 %v529, %v529
    %v543 = vadd.f32 %v539, %v540
    %v544 = vadd.f32 %v543, %v541
    %v545 = vadd.f32 %v544, %v542
    %v546 = vrot.slane %v545, 4
    %v547 = vadd.f32 %v545, %v546
    %v548 = vrot.slane %v547, 2
    %v549 = vadd.f32 %v547, %v548
    %v550 = vrot.slane %v549, 1
    %v551 = vadd.f32 %v549, %v550
    %v552 = vsel %vm150, %v538, %v551
    %553 = vrot.lane.b32.xlu0 %v552, 8
    %v554 = vpop.permute.xlu0 %553
    %v555 = vadd.f32 %v552, %v554
    %556 = vrot.lane.b32.xlu0 %v555, 16
    %v557 = vpop.permute.xlu0 %556
    %v558 = vadd.f32 %v555, %v557
    %559 = vrot.lane.b32.xlu0 %v558, 32
    %v560 = vpop.permute.xlu0 %559
    %v561 = vadd.f32 %v558, %v560
    %562 = vrot.lane.b32.xlu0 %v561, 64
    %v563 = vpop.permute.xlu0 %562
    %v564 = vadd.f32 %v561, %v563
    %v565 = vmul.f32 %v564, 0.001953125
    %v566 = vmul.f32 %v565, %v565
    %v568 = vrot.slane %v566, 7
    %v570 = vsub.f32 %v565, %v568
    %v571 = vadd.f32 %v570, 1e-05
    %v572 = vrsqrt.pop %v571
    %v574 = vrot.slane %v572, 1
    %v576 = vmul.f32 %v141, %v574
    %v577 = vlaneseq
    %v578 = vshrl.u32 %v577, 7
    %v579 = vsub.s32 0, %v578
    %v580 = vrot.slane %v565, %v579
    %v581 = vsub.f32 %v526, %v580
    %v582 = vsub.f32 %v527, %v580
    %v583 = vsub.f32 %v528, %v580
    %v584 = vsub.f32 %v529, %v580
    %v585 = vlaneseq
    %v586 = vshrl.u32 %v585, 7
    %v587 = vsub.s32 0, %v586
    %v588 = vrot.slane %v576, %v587
    %v589 = vmul.f32 %v581, %v588
    %v590 = vmul.f32 %v582, %v588
    %v591 = vmul.f32 %v583, %v588
    %v592 = vmul.f32 %v584, %v588
    %v593 = vlaneseq
    %v594 = vshrl.u32 %v593, 7
    %v595 = vsub.s32 0, %v594
    %v596 = vrot.slane %v142, %v595
    %v597 = vadd.f32 %v589, %v596
    %v598 = vadd.f32 %v590, %v596
    %v599 = vadd.f32 %v591, %v596
    %v600 = vadd.f32 %v592, %v596
    %v605 = vrot.slane %v597, 7
    %v606 = vrot.slane %v598, 7
    %v607 = vsel %vm150, %v605, %v606
    %v608 = vrot.slane %v599, 7
    %v609 = vsel %vm150, %v606, %v608
    %v610 = vrot.slane %v600, 7
    %v611 = vsel %vm150, %v608, %v610
    %v616 = vsel %vm150, 0.0, %v605
    %v617 = vsel %vm167, 0.0, %v616
    %v618 = vsel %vm168, 0.0, %v607
    %v619 = vsel %vm169, 0.0, %v609
    %v620 = vsel %vm170, 0.0, %v611
    %v621 = vrot.slane %v597, 1
    %v622 = vrot.slane %v598, 1
    %v623 = vsel %vm175, %v621, %v622
    %v624 = vrot.slane %v599, 1
    %v625 = vsel %vm175, %v622, %v624
    %v626 = vrot.slane %v600, 1
    %v627 = vsel %vm175, %v624, %v626
    %v632 = vsel %vm175, %v626, 0.0
    %v633 = vsel %vm192, 0.0, %v623
    %v634 = vsel %vm193, 0.0, %v625
    %v635 = vsel %vm194, 0.0, %v627
    %v636 = vsel %vm195, 0.0, %v632
    %v637 = vld [vmem:[#allocation7] sm:$0xff]
    %v638 = vld [vmem:[#allocation7 + $0x8] sm:$0xff]
    %v639 = vld [vmem:[#allocation7 + $0x10] sm:$0xff]
    %v640 = vld [vmem:[#allocation7 + $0x18] sm:$0xff]
    %v641 = vld [vmem:[#allocation7 + $0x20] sm:$0xff]
    %v642 = vld [vmem:[#allocation7 + $0x28] sm:$0xff]
    %v643 = vld [vmem:[#allocation7 + $0x30] sm:$0xff]
    %v644 = vld [vmem:[#allocation7 + $0x38] sm:$0xff]
    %v645 = vld [vmem:[#allocation7 + $0x40] sm:$0xff]
    %v646 = vld [vmem:[#allocation7 + $0x48] sm:$0xff]
    %v647 = vld [vmem:[#allocation7 + $0x50] sm:$0xff]
    %v648 = vld [vmem:[#allocation7 + $0x58] sm:$0xff]
    %v649 = vld [vmem:[#allocation7 + $0x60] sm:$0xff]
    %v650 = vld [vmem:[#allocation7 + $0x68] sm:$0xff]
    %v651 = vld [vmem:[#allocation7 + $0x70] sm:$0xff]
    %v652 = vld [vmem:[#allocation7 + $0x78] sm:$0xff]
    %s653 = scalar_lea.vmem [#allocation7], 128
    %v654 = vld [vmem:[%s653] sm:$0xff]
    %v655 = vld [vmem:[%s653 + $0x8] sm:$0xff]
    %v656 = vld [vmem:[%s653 + $0x10] sm:$0xff]
    %v657 = vld [vmem:[%s653 + $0x18] sm:$0xff]
    %v658 = vld [vmem:[%s653 + $0x20] sm:$0xff]
    %v659 = vld [vmem:[%s653 + $0x28] sm:$0xff]
    %v660 = vld [vmem:[%s653 + $0x30] sm:$0xff]
    %v661 = vld [vmem:[%s653 + $0x38] sm:$0xff]
    %v662 = vld [vmem:[%s653 + $0x40] sm:$0xff]
    %v663 = vld [vmem:[%s653 + $0x48] sm:$0xff]
    %v664 = vld [vmem:[%s653 + $0x50] sm:$0xff]
    %v665 = vld [vmem:[%s653 + $0x58] sm:$0xff]
    %v666 = vld [vmem:[%s653 + $0x60] sm:$0xff]
    %v667 = vld [vmem:[%s653 + $0x68] sm:$0xff]
    %v668 = vld [vmem:[%s653 + $0x70] sm:$0xff]
    %v669 = vld [vmem:[%s653 + $0x78] sm:$0xff]
    %670 = vmatprep.subr.mxu0 0.0
    %671 = vmatpush1.msra.mxu0 %v654
    %672 = vmatprep.subr.mxu0 0.0
    %673 = vmatpush1.msra.mxu0 %v655
    %674 = vmatprep.subr.mxu0 0.0
    %675 = vmatpush1.msra.mxu0 %v656
    %676 = vmatprep.subr.mxu0 0.0
    %677 = vmatpush1.msra.mxu0 %v657
    %678 = vmatprep.subr.mxu0 0.0
    %679 = vmatpush1.msra.mxu0 %v658
    %680 = vmatprep.subr.mxu0 0.0
    %681 = vmatpush1.msra.mxu0 %v659
    %682 = vmatprep.subr.mxu0 0.0
    %683 = vmatpush1.msra.mxu0 %v660
    %684 = vmatprep.subr.mxu0 0.0
    %685 = vmatpush1.msra.mxu0 %v661
    %686 = vmatprep.subr.mxu0 0.0
    %687 = vmatpush1.msra.mxu0 %v662
    %688 = vmatprep.subr.mxu0 0.0
    %689 = vmatpush1.msra.mxu0 %v663
    %690 = vmatprep.subr.mxu0 0.0
    %691 = vmatpush1.msra.mxu0 %v664
    %692 = vmatprep.subr.mxu0 0.0
    %693 = vmatpush1.msra.mxu0 %v665
    %694 = vmatprep.subr.mxu0 0.0
    %695 = vmatpush1.msra.mxu0 %v666
    %696 = vmatprep.subr.mxu0 0.0
    %697 = vmatpush1.msra.mxu0 %v667
    %698 = vmatprep.subr.mxu0 0.0
    %699 = vmatpush1.msra.mxu0 %v668
    %700 = vmatprep.subr.mxu0 0.0
    %701 = vmatpush1.msra.mxu0 %v669
    %702 = vmatprep.subr.mxu0 0.0
    %703 = vmatpush1.msra.mxu0 0.0
    %704 = vmatprep.subr.mxu0 0.0
    %705 = vmatpush1.msra.mxu0 0.0
    %706 = vmatprep.subr.mxu0 0.0
    %707 = vmatpush1.msra.mxu0 0.0
    %708 = vmatprep.subr.mxu0 0.0
    %709 = vmatpush1.msra.mxu0 0.0
    %710 = vmatprep.subr.mxu0 0.0
    %711 = vmatpush1.msra.mxu0 0.0
    %712 = vmatprep.subr.mxu0 0.0
    %713 = vmatpush1.msra.mxu0 0.0
    %714 = vmatprep.subr.mxu0 0.0
    %715 = vmatpush1.msra.mxu0 0.0
    %716 = vmatprep.subr.mxu0 0.0
    %717 = vmatpush1.msra.mxu0 0.0
    %718 = vmatprep.subr.mxu0 0.0
    %719 = vmatpush1.msra.mxu0 0.0
    %720 = vmatprep.subr.mxu0 0.0
    %721 = vmatpush1.msra.mxu0 0.0
    %722 = vmatprep.subr.mxu0 0.0
    %723 = vmatpush1.msra.mxu0 0.0
    %724 = vmatprep.subr.mxu0 0.0
    %725 = vmatpush1.msra.mxu0 0.0
    %726 = vmatprep.subr.mxu0 0.0
    %727 = vmatpush1.msra.mxu0 0.0
    %728 = vmatprep.subr.mxu0 0.0
    %729 = vmatpush1.msra.mxu0 0.0
    %730 = vmatprep.subr.mxu0 0.0
    %731 = vmatpush1.msra.mxu0 0.0
    %732 = vmatprep.subr.mxu0 0.0
    %733 = vmatpush1.msra.mxu0 0.0
    %734 = vmatprep.mubr.f32.mxu0 0.0
    %735 = vmatmul.mubr.f32.gmra.mrb[0].mxu0 %v597
    %v736 = vpop.f32.mrb[0].mxu0
    %v737 = vadd.f32 0.0, %v736
    %v738 = vpop.f32.mrb[0].mxu0
    %739 = vmatprep.mubr.f32.mxu0 0.0
    %740 = vmatmul.mubr.f32.gmra.mrb[0].mxu0 %v598
    %v741 = vpop.f32.mrb[0].mxu0
    %v742 = vadd.f32 0.0, %v741
    %v743 = vpop.f32.mrb[0].mxu0
    %744 = vmatprep.mubr.f32.mxu0 0.0
    %745 = vmatmul.mubr.f32.gmra.mrb[0].mxu0 %v599
    %v746 = vpop.f32.mrb[0].mxu0
    %v747 = vadd.f32 0.0, %v746
    %v748 = vpop.f32.mrb[0].mxu0
    %749 = vmatprep.mubr.f32.mxu0 0.0
    %750 = vmatmul.mubr.f32.gmra.mrb[0].mxu0 %v600
    %v751 = vpop.f32.mrb[0].mxu0
    %v752 = vadd.f32 0.0, %v751
    %v753 = vpop.f32.mrb[0].mxu0
    %754 = vdwg.mxu0
    %755 = vmatprep.subr.mxu0 0.0
    %756 = vmatpush1.msra.mxu0 %v637
    %757 = vmatprep.subr.mxu0 0.0
    %758 = vmatpush1.msra.mxu0 %v638
    %759 = vmatprep.subr.mxu0 0.0
    %760 = vmatpush1.msra.mxu0 %v639
    %761 = vmatprep.subr.mxu0 0.0
    %762 = vmatpush1.msra.mxu0 %v640
    %763 = vmatprep.subr.mxu0 0.0
    %764 = vmatpush1.msra.mxu0 %v641
    %765 = vmatprep.subr.mxu0 0.0
    %766 = vmatpush1.msra.mxu0 %v642
    %767 = vmatprep.subr.mxu0 0.0
    %768 = vmatpush1.msra.mxu0 %v643
    %769 = vmatprep.subr.mxu0 0.0
    %770 = vmatpush1.msra.mxu0 %v644
    %771 = vmatprep.subr.mxu0 0.0
    %772 = vmatpush1.msra.mxu0 %v645
    %773 = vmatprep.subr.mxu0 0.0
    %774 = vmatpush1.msra.mxu0 %v646
    %775 = vmatprep.subr.mxu0 0.0
    %776 = vmatpush1.msra.mxu0 %v647
    %777 = vmatprep.subr.mxu0 0.0
    %778 = vmatpush1.msra.mxu0 %v648
    %779 = vmatprep.subr.mxu0 0.0
    %780 = vmatpush1.msra.mxu0 %v649
    %781 = vmatprep.subr.mxu0 0.0
    %782 = vmatpush1.msra.mxu0 %v650
    %783 = vmatprep.subr.mxu0 0.0
    %784 = vmatpush1.msra.mxu0 %v651
    %785 = vmatprep.subr.mxu0 0.0
    %786 = vmatpush1.msra.mxu0 %v652
    %787 = vmatprep.subr.mxu0 0.0
    %788 = vmatpush1.msra.mxu0 0.0
    %789 = vmatprep.subr.mxu0 0.0
    %790 = vmatpush1.msra.mxu0 0.0
    %791 = vmatprep.subr.mxu0 0.0
    %792 = vmatpush1.msra.mxu0 0.0
    %793 = vmatprep.subr.mxu0 0.0
    %794 = vmatpush1.msra.mxu0 0.0
    %795 = vmatprep.subr.mxu0 0.0
    %796 = vmatpush1.msra.mxu0 0.0
    %797 = vmatprep.subr.mxu0 0.0
    %798 = vmatpush1.msra.mxu0 0.0
    %799 = vmatprep.subr.mxu0 0.0
    %800 = vmatpush1.msra.mxu0 0.0
    %801 = vmatprep.subr.mxu0 0.0
    %802 = vmatpush1.msra.mxu0 0.0
    %803 = vmatprep.subr.mxu0 0.0
    %804 = vmatpush1.msra.mxu0 0.0
    %805 = vmatprep.subr.mxu0 0.0
    %806 = vmatpush1.msra.mxu0 0.0
    %807 = vmatprep.subr.mxu0 0.0
    %808 = vmatpush1.msra.mxu0 0.0
    %809 = vmatprep.subr.mxu0 0.0
    %810 = vmatpush1.msra.mxu0 0.0
    %811 = vmatprep.subr.mxu0 0.0
    %812 = vmatpush1.msra.mxu0 0.0
    %813 = vmatprep.subr.mxu0 0.0
    %814 = vmatpush1.msra.mxu0 0.0
    %815 = vmatprep.subr.mxu0 0.0
    %816 = vmatpush1.msra.mxu0 0.0
    %817 = vmatprep.subr.mxu0 0.0
    %818 = vmatpush1.msra.mxu0 0.0
    %819 = vmatprep.mubr.f32.mxu0 0.0
    %820 = vmatmul.mubr.f32.gmra.mrb[0].mxu0 %v617
    %v821 = vpop.f32.mrb[0].mxu0
    %v822 = vadd.f32 %v737, %v821
    %v823 = vpop.f32.mrb[0].mxu0
    %824 = vmatprep.mubr.f32.mxu0 0.0
    %825 = vmatmul.mubr.f32.gmra.mrb[0].mxu0 %v618
    %v826 = vpop.f32.mrb[0].mxu0
    %v827 = vadd.f32 %v742, %v826
    %v828 = vpop.f32.mrb[0].mxu0
    %829 = vmatprep.mubr.f32.mxu0 0.0
    %830 = vmatmul.mubr.f32.gmra.mrb[0].mxu0 %v619
    %v831 = vpop.f32.mrb[0].mxu0
    %v832 = vadd.f32 %v747, %v831
    %v833 = vpop.f32.mrb[0].mxu0
    %834 = vmatprep.mubr.f32.mxu0 0.0
    %835 = vmatmul.mubr.f32.gmra.mrb[0].mxu0 %v620
    %v836 = vpop.f32.mrb[0].mxu0
    %v837 = vadd.f32 %v752, %v836
    %v838 = vpop.f32.mrb[0].mxu0
    %839 = vdwg.mxu0
    %s840 = scalar_lea.vmem [#allocation7], 256
    %v841 = vld [vmem:[%s840] sm:$0xff]
    %v842 = vld [vmem:[%s840 + $0x8] sm:$0xff]
    %v843 = vld [vmem:[%s840 + $0x10] sm:$0xff]
    %v844 = vld [vmem:[%s840 + $0x18] sm:$0xff]
    %v845 = vld [vmem:[%s840 + $0x20] sm:$0xff]
    %v846 = vld [vmem:[%s840 + $0x28] sm:$0xff]
    %v847 = vld [vmem:[%s840 + $0x30] sm:$0xff]
    %v848 = vld [vmem:[%s840 + $0x38] sm:$0xff]
    %v849 = vld [vmem:[%s840 + $0x40] sm:$0xff]
    %v850 = vld [vmem:[%s840 + $0x48] sm:$0xff]
    %v851 = vld [vmem:[%s840 + $0x50] sm:$0xff]
    %v852 = vld [vmem:[%s840 + $0x58] sm:$0xff]
    %v853 = vld [vmem:[%s840 + $0x60] sm:$0xff]
    %v854 = vld [vmem:[%s840 + $0x68] sm:$0xff]
    %v855 = vld [vmem:[%s840 + $0x70] sm:$0xff]
    %v856 = vld [vmem:[%s840 + $0x78] sm:$0xff]
    %857 = vmatprep.subr.mxu0 0.0
    %858 = vmatpush1.msra.mxu0 %v841
    %859 = vmatprep.subr.mxu0 0.0
    %860 = vmatpush1.msra.mxu0 %v842
    %861 = vmatprep.subr.mxu0 0.0
    %862 = vmatpush1.msra.mxu0 %v843
    %863 = vmatprep.subr.mxu0 0.0
    %864 = vmatpush1.msra.mxu0 %v844
    %865 = vmatprep.subr.mxu0 0.0
    %866 = vmatpush1.msra.mxu0 %v845
    %867 = vmatprep.subr.mxu0 0.0
    %868 = vmatpush1.msra.mxu0 %v846
    %869 = vmatprep.subr.mxu0 0.0
    %870 = vmatpush1.msra.mxu0 %v847
    %871 = vmatprep.subr.mxu0 0.0
    %872 = vmatpush1.msra.mxu0 %v848
    %873 = vmatprep.subr.mxu0 0.0
    %874 = vmatpush1.msra.mxu0 %v849
    %875 = vmatprep.subr.mxu0 0.0
    %876 = vmatpush1.msra.mxu0 %v850
    %877 = vmatprep.subr.mxu0 0.0
    %878 = vmatpush1.msra.mxu0 %v851
    %879 = vmatprep.subr.mxu0 0.0
    %880 = vmatpush1.msra.mxu0 %v852
    %881 = vmatprep.subr.mxu0 0.0
    %882 = vmatpush1.msra.mxu0 %v853
    %883 = vmatprep.subr.mxu0 0.0
    %884 = vmatpush1.msra.mxu0 %v854
    %885 = vmatprep.subr.mxu0 0.0
    %886 = vmatpush1.msra.mxu0 %v855
    %887 = vmatprep.subr.mxu0 0.0
    %888 = vmatpush1.msra.mxu0 %v856
    %889 = vmatprep.subr.mxu0 0.0
    %890 = vmatpush1.msra.mxu0 0.0
    %891 = vmatprep.subr.mxu0 0.0
    %892 = vmatpush1.msra.mxu0 0.0
    %893 = vmatprep.subr.mxu0 0.0
    %894 = vmatpush1.msra.mxu0 0.0
    %895 = vmatprep.subr.mxu0 0.0
    %896 = vmatpush1.msra.mxu0 0.0
    %897 = vmatprep.subr.mxu0 0.0
    %898 = vmatpush1.msra.mxu0 0.0
    %899 = vmatprep.subr.mxu0 0.0
    %900 = vmatpush1.msra.mxu0 0.0
    %901 = vmatprep.subr.mxu0 0.0
    %902 = vmatpush1.msra.mxu0 0.0
    %903 = vmatprep.subr.mxu0 0.0
    %904 = vmatpush1.msra.mxu0 0.0
    %905 = vmatprep.subr.mxu0 0.0
    %906 = vmatpush1.msra.mxu0 0.0
    %907 = vmatprep.subr.mxu0 0.0
    %908 = vmatpush1.msra.mxu0 0.0
    %909 = vmatprep.subr.mxu0 0.0
    %910 = vmatpush1.msra.mxu0 0.0
    %911 = vmatprep.subr.mxu0 0.0
    %912 = vmatpush1.msra.mxu0 0.0
    %913 = vmatprep.subr.mxu0 0.0
    %914 = vmatpush1.msra.mxu0 0.0
    %915 = vmatprep.subr.mxu0 0.0
    %916 = vmatpush1.msra.mxu0 0.0
    %917 = vmatprep.subr.mxu0 0.0
    %918 = vmatpush1.msra.mxu0 0.0
    %919 = vmatprep.subr.mxu0 0.0
    %920 = vmatpush1.msra.mxu0 0.0
    %921 = vmatprep.mubr.f32.mxu0 0.0
    %922 = vmatmul.mubr.f32.gmra.mrb[0].mxu0 %v633
    %v923 = vpop.f32.mrb[0].mxu0
    %v924 = vadd.f32 0.0, %v923
    %v925 = vpop.f32.mrb[0].mxu0
    %926 = vmatprep.mubr.f32.mxu0 0.0
    %927 = vmatmul.mubr.f32.gmra.mrb[0].mxu0 %v634
    %v928 = vpop.f32.mrb[0].mxu0
    %v929 = vadd.f32 0.0, %v928
    %v930 = vpop.f32.mrb[0].mxu0
    %931 = vmatprep.mubr.f32.mxu0 0.0
    %932 = vmatmul.mubr.f32.gmra.mrb[0].mxu0 %v635
    %v933 = vpop.f32.mrb[0].mxu0
    %v934 = vadd.f32 0.0, %v933
    %v935 = vpop.f32.mrb[0].mxu0
    %936 = vmatprep.mubr.f32.mxu0 0.0
    %937 = vmatmul.mubr.f32.gmra.mrb[0].mxu0 %v636
    %v938 = vpop.f32.mrb[0].mxu0
    %v939 = vadd.f32 0.0, %v938
    %v940 = vpop.f32.mrb[0].mxu0
    %941 = vdwg.mxu0
    %v942 = vadd.f32 %v822, %v924
    %v943 = vadd.f32 %v827, %v929
    %v944 = vadd.f32 %v832, %v934
    %v945 = vadd.f32 %v837, %v939
    %vm946 = vcmp.gt.f32.partialorder %v942, 0.0
    %vm947 = vcmp.gt.f32.partialorder %v943, 0.0
    %vm948 = vcmp.gt.f32.partialorder %v944, 0.0
    %vm949 = vcmp.gt.f32.partialorder %v945, 0.0
    %v950 = vmul.f32 %v942, 0.01
    %v951 = vmul.f32 %v943, 0.01
    %v952 = vmul.f32 %v944, 0.01
    %v953 = vmul.f32 %v945, 0.01
    %v954 = vsel %vm946, %v942, %v950
    %v955 = vsel %vm947, %v943, %v951
    %v956 = vsel %vm948, %v944, %v952
    %v957 = vsel %vm949, %v945, %v953
    %v958 = vadd.f32 %v954, %v955
    %v959 = vadd.f32 %v958, %v956
    %v960 = vadd.f32 %v959, %v957
    %v961 = vrot.slane %v960, 4
    %v962 = vadd.f32 %v960, %v961
    %v963 = vrot.slane %v962, 2
    %v964 = vadd.f32 %v962, %v963
    %v965 = vrot.slane %v964, 1
    %v966 = vadd.f32 %v964, %v965
    %v967 = vmul.f32 %v954, %v954
    %v968 = vmul.f32 %v955, %v955
    %v969 = vmul.f32 %v956, %v956
    %v970 = vmul.f32 %v957, %v957
    %v971 = vadd.f32 %v967, %v968
    %v972 = vadd.f32 %v971, %v969
    %v973 = vadd.f32 %v972, %v970
    %v974 = vrot.slane %v973, 4
    %v975 = vadd.f32 %v973, %v974
    %v976 = vrot.slane %v975, 2
    %v977 = vadd.f32 %v975, %v976
    %v978 = vrot.slane %v977, 1
    %v979 = vadd.f32 %v977, %v978
    %v980 = vsel %vm150, %v966, %v979
    %981 = vrot.lane.b32.xlu0 %v980, 8
    %v982 = vpop.permute.xlu0 %981
    %v983 = vadd.f32 %v980, %v982
    %984 = vrot.lane.b32.xlu0 %v983, 16
    %v985 = vpop.permute.xlu0 %984
    %v986 = vadd.f32 %v983, %v985
    %987 = vrot.lane.b32.xlu0 %v986, 32
    %v988 = vpop.permute.xlu0 %987
    %v989 = vadd.f32 %v986, %v988
    %990 = vrot.lane.b32.xlu0 %v989, 64
    %v991 = vpop.permute.xlu0 %990
    %v992 = vadd.f32 %v989, %v991
    %v993 = vmul.f32 %v992, 0.001953125
    %v994 = vmul.f32 %v993, %v993
    %v996 = vrot.slane %v994, 7
    %v998 = vsub.f32 %v993, %v996
    %v999 = vadd.f32 %v998, 1e-05
    %v1000 = vrsqrt.pop %v999
    %v1002 = vrot.slane %v1000, 1
    %v1004 = vmul.f32 %v143, %v1002
    %v1005 = vlaneseq
    %v1006 = vshrl.u32 %v1005, 7
    %v1007 = vsub.s32 0, %v1006
    %v1008 = vrot.slane %v993, %v1007
    %v1009 = vsub.f32 %v954, %v1008
    %v1010 = vsub.f32 %v955, %v1008
    %v1011 = vsub.f32 %v956, %v1008
    %v1012 = vsub.f32 %v957, %v1008
    %v1013 = vlaneseq
    %v1014 = vshrl.u32 %v1013, 7
    %v1015 = vsub.s32 0, %v1014
    %v1016 = vrot.slane %v1004, %v1015
    %v1017 = vmul.f32 %v1009, %v1016
    %v1018 = vmul.f32 %v1010, %v1016
    %v1019 = vmul.f32 %v1011, %v1016
    %v1020 = vmul.f32 %v1012, %v1016
    %v1021 = vlaneseq
    %v1022 = vshrl.u32 %v1021, 7
    %v1023 = vsub.s32 0, %v1022
    %v1024 = vrot.slane %v144, %v1023
    %v1025 = vadd.f32 %v1017, %v1024
    %v1026 = vadd.f32 %v1018, %v1024
    %v1027 = vadd.f32 %v1019, %v1024
    %v1028 = vadd.f32 %v1020, %v1024
    %v1029 = vld [vmem:[#allocation8] sm:$0xff]
    %v1030 = vld [vmem:[#allocation8 + $0x8] sm:$0xff]
    %v1031 = vld [vmem:[#allocation8 + $0x10] sm:$0xff]
    %v1032 = vld [vmem:[#allocation8 + $0x18] sm:$0xff]
    %v1033 = vld [vmem:[#allocation8 + $0x20] sm:$0xff]
    %v1034 = vld [vmem:[#allocation8 + $0x28] sm:$0xff]
    %v1035 = vld [vmem:[#allocation8 + $0x30] sm:$0xff]
    %v1036 = vld [vmem:[#allocation8 + $0x38] sm:$0xff]
    %v1037 = vlaneseq
    %v1038 = vshrl.u32 %v1037, 7
    %v1039 = vsub.s32 0, %v1038
    %v1040 = vrot.slane %v145, %v1039
    %1041 = vmatprep.subr.mxu0 0.0
    %1042 = vmatpush1.msra.mxu0 %v1029
    %1043 = vmatprep.subr.mxu0 0.0
    %1044 = vmatpush1.msra.mxu0 %v1030
    %1045 = vmatprep.subr.mxu0 0.0
    %1046 = vmatpush1.msra.mxu0 %v1031
    %1047 = vmatprep.subr.mxu0 0.0
    %1048 = vmatpush1.msra.mxu0 %v1032
    %1049 = vmatprep.subr.mxu0 0.0
    %1050 = vmatpush1.msra.mxu0 %v1033
    %1051 = vmatprep.subr.mxu0 0.0
    %1052 = vmatpush1.msra.mxu0 %v1034
    %1053 = vmatprep.subr.mxu0 0.0
    %1054 = vmatpush1.msra.mxu0 %v1035
    %1055 = vmatprep.subr.mxu0 0.0
    %1056 = vmatpush1.msra.mxu0 %v1036
    %1057 = vmatprep.subr.mxu0 0.0
    %1058 = vmatpush1.msra.mxu0 0.0
    %1059 = vmatprep.subr.mxu0 0.0
    %1060 = vmatpush1.msra.mxu0 0.0
    %1061 = vmatprep.subr.mxu0 0.0
    %1062 = vmatpush1.msra.mxu0 0.0
    %1063 = vmatprep.subr.mxu0 0.0
    %1064 = vmatpush1.msra.mxu0 0.0
    %1065 = vmatprep.subr.mxu0 0.0
    %1066 = vmatpush1.msra.mxu0 0.0
    %1067 = vmatprep.subr.mxu0 0.0
    %1068 = vmatpush1.msra.mxu0 0.0
    %1069 = vmatprep.subr.mxu0 0.0
    %1070 = vmatpush1.msra.mxu0 0.0
    %1071 = vmatprep.subr.mxu0 0.0
    %1072 = vmatpush1.msra.mxu0 0.0
    %1073 = vmatprep.subr.mxu0 0.0
    %1074 = vmatpush1.msra.mxu0 0.0
    %1075 = vmatprep.subr.mxu0 0.0
    %1076 = vmatpush1.msra.mxu0 0.0
    %1077 = vmatprep.subr.mxu0 0.0
    %1078 = vmatpush1.msra.mxu0 0.0
    %1079 = vmatprep.subr.mxu0 0.0
    %1080 = vmatpush1.msra.mxu0 0.0
    %1081 = vmatprep.subr.mxu0 0.0
    %1082 = vmatpush1.msra.mxu0 0.0
    %1083 = vmatprep.subr.mxu0 0.0
    %1084 = vmatpush1.msra.mxu0 0.0
    %1085 = vmatprep.subr.mxu0 0.0
    %1086 = vmatpush1.msra.mxu0 0.0
    %1087 = vmatprep.subr.mxu0 0.0
    %1088 = vmatpush1.msra.mxu0 0.0
    %1089 = vmatprep.subr.mxu0 0.0
    %1090 = vmatpush1.msra.mxu0 0.0
    %1091 = vmatprep.subr.mxu0 0.0
    %1092 = vmatpush1.msra.mxu0 0.0
    %1093 = vmatprep.subr.mxu0 0.0
    %1094 = vmatpush1.msra.mxu0 0.0
    %1095 = vmatprep.subr.mxu0 0.0
    %1096 = vmatpush1.msra.mxu0 0.0
    %1097 = vmatprep.subr.mxu0 0.0
    %1098 = vmatpush1.msra.mxu0 0.0
    %1099 = vmatprep.subr.mxu0 0.0
    %1100 = vmatpush1.msra.mxu0 0.0
    %1101 = vmatprep.subr.mxu0 0.0
    %1102 = vmatpush1.msra.mxu0 0.0
    %1103 = vmatprep.subr.mxu0 0.0
    %1104 = vmatpush1.msra.mxu0 0.0
    %1105 = vmatprep.mubr.f32.mxu0 0.0
    %1106 = vmatmul.mubr.f32.gmra.mrb[0].mxu0 %v218
    %v1107 = vpop.f32.mrb[0].mxu0
    %v1108 = vadd.f32 %v1040, %v1107
    %v1109 = vpop.f32.mrb[0].mxu0
    %1110 = vmatprep.mubr.f32.mxu0 0.0
    %1111 = vmatmul.mubr.f32.gmra.mrb[0].mxu0 %v220
    %v1112 = vpop.f32.mrb[0].mxu0
    %v1113 = vadd.f32 %v1040, %v1112
    %v1114 = vpop.f32.mrb[0].mxu0
    %1115 = vmatprep.mubr.f32.mxu0 0.0
    %1116 = vmatmul.mubr.f32.gmra.mrb[0].mxu0 %v222
    %v1117 = vpop.f32.mrb[0].mxu0
    %v1118 = vadd.f32 %v1040, %v1117
    %v1119 = vpop.f32.mrb[0].mxu0
    %1120 = vmatprep.mubr.f32.mxu0 0.0
    %1121 = vmatmul.mubr.f32.gmra.mrb[0].mxu0 %v224
    %v1122 = vpop.f32.mrb[0].mxu0
    %v1123 = vadd.f32 %v1040, %v1122
    %v1124 = vpop.f32.mrb[0].mxu0
    %1125 = vdwg.mxu0
    %v1126 = vadd.f32 %v1025, %v1108
    %v1127 = vadd.f32 %v1026, %v1113
    %v1128 = vadd.f32 %v1027, %v1118
    %v1129 = vadd.f32 %v1028, %v1123
    %vm1130 = vcmp.gt.f32.partialorder %v1126, 0.0
    %vm1131 = vcmp.gt.f32.partialorder %v1127, 0.0
    %vm1132 = vcmp.gt.f32.partialorder %v1128, 0.0
    %vm1133 = vcmp.gt.f32.partialorder %v1129, 0.0
    %v1134 = vmul.f32 %v1126, 0.01
    %v1135 = vmul.f32 %v1127, 0.01
    %v1136 = vmul.f32 %v1128, 0.01
    %v1137 = vmul.f32 %v1129, 0.01
    %v1138 = vsel %vm1130, %v1126, %v1134
    %v1139 = vsel %vm1131, %v1127, %v1135
    %v1140 = vsel %vm1132, %v1128, %v1136
    %v1141 = vsel %vm1133, %v1129, %v1137
    %1142 = vst [vmem:[#allocation10] sm:$0xff] %v1138
    %1143 = vst [vmem:[#allocation10 + $0x8] sm:$0xff] %v1139
    %1144 = vst [vmem:[#allocation10 + $0x10] sm:$0xff] %v1140
    %1145 = vst [vmem:[#allocation10 + $0x18] sm:$0xff] %v1141
    // Predicated region
    $region38: #{tpu_custom_call.1} parent=1 // pred_check
      _
    $region39: #{tpu_custom_call.1} parent=1 // pred_check_branch
      %1147 = sbr.rel (0) target = $region41
    $region40: #{tpu_custom_call.1} parent=1 // pred_region
      %s1149 = ssub.s32 512, 512
      %1150 = vsyncadd [#allocation4], %s1149
      %s1151 = sshll.u32 [#allocation10], 4
      %s1152 = int_to_ptr.vmem [resolvable:$true] %s1151
      %1157 = dma.vmem_to_hbm [thread:$0]  %s1152, 512, %s5, [#allocation4], 128, 128, 8
    $region41: #{tpu_custom_call.1} parent=1 // pred_fallthru
      _
    // Predicated region
    $region42: #{tpu_custom_call.1} parent=1 // pred_check
      _
    $region43: #{tpu_custom_call.1} parent=1 // pred_check_branch
      %1159 = sbr.rel (0) target = $region45
    $region44: #{tpu_custom_call.1} parent=1 // pred_region
      %1160 = dma.done [#allocation4], 512
    $region45: #{tpu_custom_call.1} parent=1 // pred_fallthru
      _
    %1161 = vsyncpa [#allocation3], 1
    %1162 = vsyncpa [#allocation6], 1
    %1163 = vsyncpa [#allocation9], 1
    %1164 = vsyncpa [#allocation4], 1

</llo_original>
